<compile_context>
chip_gen: v7x
topology: tpu7x:2x2x1
jax: 0.10.0
libtpu: 0.0.40
codegen_flags: <defaults>
</compile_context>

<pallas_src>
import jax
import jax.numpy as jnp
from jax import lax
from jax.experimental import pallas as pl
from jax.experimental.pallas import tpu as pltpu  # noqa: F401  (kept for TPU-specific tuning hooks)

# ----- problem sizes (small, consistent with the module) -----
BATCH = 2
SEQ = 8
EMBED = 32
HEADS = 4
HEAD_DIM = EMBED // HEADS
FWD_EXPANSION = 4
FF_HIDDEN = FWD_EXPANSION * EMBED
LN_EPS = 1e-5  # nn.LayerNorm default

_NL = BATCH * SEQ          # 16 rows (b, l)
_HB = HEADS * BATCH        # 8 attention "batches" (h, b)


def transformer_block_kernel(x_ref, qres_ref, wqkv_ref, wow1_ref, w2_ref, b_ref,
                             out_ref):
    f32 = jnp.float32
    bf16 = jnp.bfloat16

    x0 = x_ref[...]        # (N*L, E) f32 -- Q, K, V all come from `values` (ref bug)
    q_res = qres_ref[...]  # (N*L, E) f32 -- residual uses the `query` input

    # ---- packed parameters ----
    w_qkv = wqkv_ref[...]                              # (D, 3D) bf16, Wq pre-scaled
    wo = wow1_ref[:, 0:EMBED]                          # (E, E)   bf16
    w1 = wow1_ref[:, EMBED:EMBED + FF_HIDDEN]          # (E, FF)  bf16
    w2 = w2_ref[...]                                   # (FF, E)  bf16 (K, N) layout

    bo = b_ref[0:1, 0:EMBED]      # (1, E) f32, implicit broadcast at use
    g1 = b_ref[1:2, 0:EMBED]
    be1 = b_ref[2:3, 0:EMBED]
    bb1 = b_ref[3:4, 0:FF_HIDDEN]
    bb2 = b_ref[4:5, 0:EMBED]
    g2 = b_ref[5:6, 0:EMBED]
    be2 = b_ref[6:7, 0:EMBED]

    # ---- head-major re-layout: rows ordered (h, b, l), lanes = head_dim ----
    x_r = jnp.concatenate(
        [x0[:, h * HEAD_DIM:(h + 1) * HEAD_DIM] for h in range(HEADS)],
        axis=0)                                          # (H*N*L, D)

    # ---- fused Q/K/V projection for every head & batch: ONE MXU matmul ----
    # (the per-head Linear shares weights across heads, so one (D, 3D) weight
    #  applied to head-major rows covers all heads; 1/sqrt(E) folded into Wq)
    qkv = jnp.dot(x_r.astype(bf16), w_qkv, preferred_element_type=f32)  # (H*N*L, 3D)

    q = qkv[:, 0:HEAD_DIM].reshape(_HB, SEQ, HEAD_DIM)
    k = qkv[:, HEAD_DIM:2 * HEAD_DIM].reshape(_HB, SEQ, HEAD_DIM)
    v = qkv[:, 2 * HEAD_DIM:3 * HEAD_DIM].reshape(_HB, SEQ, HEAD_DIM)

    # ---- attention: one batched score matmul + one softmax chain + one PV ----
    energy = jnp.einsum("bqd,bkd->bqk", q.astype(bf16), k.astype(bf16),
                        preferred_element_type=f32)      # (H*B, Lq, Lk)
    m = jnp.max(energy, axis=-1, keepdims=True)
    p = jnp.exp(energy - m)
    denom = jnp.sum(p, axis=-1, keepdims=True)
    attn = p * pl.reciprocal(denom, approx=True)         # EUP reciprocal
    pv = jnp.einsum("bqk,bkd->bqd", attn.astype(bf16), v.astype(bf16),
                    preferred_element_type=f32)          # (H*B, Lq, D)

    # ---- back to (N*L, E): heads returned to the lane dimension ----
    attn_out = jnp.concatenate(
        [pv[h * BATCH:(h + 1) * BATCH] for h in range(HEADS)], axis=-1)  # (B, L, E)
    attn_out = attn_out.reshape(_NL, EMBED)

    # ---- fc_out ----
    attn_out = jnp.dot(attn_out.astype(bf16), wo, preferred_element_type=f32) + bo

    # ---- residual + LayerNorm1 (dropout == identity in eval) ----
    x = attn_out + q_res
    mu = jnp.mean(x, axis=-1, keepdims=True)
    var = jnp.mean((x - mu) ** 2, axis=-1, keepdims=True)
    x = (x - mu) * lax.rsqrt(var + LN_EPS) * g1 + be1

    # ---- feed forward: Linear -> ReLU -> Linear (W2 fed in (K, N) layout) ----
    h1 = jnp.dot(x.astype(bf16), w1, preferred_element_type=f32) + bb1
    h1 = jnp.maximum(h1, 0.0)
    ff = jnp.dot(h1.astype(bf16), w2, preferred_element_type=f32) + bb2

    # ---- residual + LayerNorm2 (dropout == identity in eval) ----
    y = ff + x
    mu2 = jnp.mean(y, axis=-1, keepdims=True)
    var2 = jnp.mean((y - mu2) ** 2, axis=-1, keepdims=True)
    y = (y - mu2) * lax.rsqrt(var2 + LN_EPS) * g2 + be2

    out_ref[...] = y.astype(out_ref.dtype)


def pack_params(p):
    """Pack parameters into a few contiguous slabs. Run ONCE at init (hoisted
    out of the per-call path); weights pre-cast to bf16 for single-pass MXU."""
    f32, bf16 = jnp.float32, jnp.bfloat16
    scale = 1.0 / (float(EMBED) ** 0.5)   # reference scales by embed_size**0.5

    w_qkv = jnp.concatenate([p["wq"] * scale, p["wk"], p["wv"]],
                            axis=1).astype(bf16)                  # (D, 3D)
    w_ow1 = jnp.concatenate([p["wo"], p["w1"]], axis=1).astype(bf16)  # (E, E+FF)
    w2 = p["w2"].astype(bf16)                                      # (FF, E)

    b = jnp.zeros((8, 128), f32)
    b = b.at[0, :EMBED].set(p["bo"].reshape(-1))
    b = b.at[1, :EMBED].set(p["g1"].reshape(-1))
    b = b.at[2, :EMBED].set(p["be1"].reshape(-1))
    b = b.at[3, :FF_HIDDEN].set(p["bb1"].reshape(-1))
    b = b.at[4, :EMBED].set(p["bb2"].reshape(-1))
    b = b.at[5, :EMBED].set(p["g2"].reshape(-1))
    b = b.at[6, :EMBED].set(p["be2"].reshape(-1))
    return w_qkv, w_ow1, w2, b


@jax.jit
def transformer_block(val, key, que, w_qkv, w_ow1, w2, b):
    # `key` is unused because the reference module builds K (and Q) from `values`.
    del key
    N, L, E = val.shape
    assert N == BATCH and L == SEQ and E == EMBED

    x = val.reshape(N * L, E)
    q_res = que.reshape(N * L, E)

    # Single gridless invocation: whole problem resident in VMEM (~30 KiB).
    out = pl.pallas_call(
        transformer_block_kernel,
        out_shape=jax.ShapeDtypeStruct((N * L, E), val.dtype),
        cost_estimate=pl.CostEstimate(flops=340_000, transcendentals=640,
                                      bytes_accessed=29_056),
    )(x, q_res, w_qkv, w_ow1, w2, b)
    return out.reshape(N, L, E)


def init_params(rng):
    ks = jax.random.split(rng, 8)
    s = 0.1
    f32 = jnp.float32
    return dict(
        # per-head projections (headDim -> headDim, no bias)
        wv=jax.random.normal(ks[0], (HEAD_DIM, HEAD_DIM), f32) * s,
        wk=jax.random.normal(ks[1], (HEAD_DIM, HEAD_DIM), f32) * s,
        wq=jax.random.normal(ks[2], (HEAD_DIM, HEAD_DIM), f32) * s,
        # fc_out (embed -> embed, with bias)
        wo=jax.random.normal(ks[3], (EMBED, EMBED), f32) * s,
        bo=jax.random.normal(ks[4], (1, EMBED), f32) * s,
        # LayerNorm1 (default init)
        g1=jnp.ones((1, EMBED), f32),
        be1=jnp.zeros((1, EMBED), f32),
        # feed forward
        w1=jax.random.normal(ks[5], (EMBED, FF_HIDDEN), f32) * s,
        bb1=jax.random.normal(ks[6], (1, FF_HIDDEN), f32) * s,
        w2=jax.random.normal(ks[7], (FF_HIDDEN, EMBED), f32) * s,
        bb2=jnp.zeros((1, EMBED), f32),
        # LayerNorm2 (default init)
        g2=jnp.ones((1, EMBED), f32),
        be2=jnp.zeros((1, EMBED), f32),
    )


def reference_block(val, key, que, p):
    """Pure-JAX f32 reference mirroring the (buggy) torch forward with mask=None."""
    del key
    N, L, E = val.shape
    x0 = val.reshape(N, L, HEADS, HEAD_DIM)
    v = jnp.einsum("nlhd,de->nlhe", x0, p["wv"])
    k = jnp.einsum("nlhd,de->nlhe", x0, p["wk"])
    q = jnp.einsum("nlhd,de->nlhe", x0, p["wq"])
    energy = jnp.einsum("nqhd,nkhd->nhqk", q, k) / (E ** 0.5)
    attn = jax.nn.softmax(energy, axis=-1)
    out = jnp.einsum("nhql,nlhd->nqhd", attn, v).reshape(N, L, E)
    out = out @ p["wo"] + p["bo"]
    x = out + que
    x = (x - x.mean(-1, keepdims=True)) / jnp.sqrt(x.var(-1, keepdims=True) + LN_EPS)
    x = x * p["g1"] + p["be1"]
    ff = jnp.maximum(x @ p["w1"] + p["bb1"], 0.0) @ p["w2"] + p["bb2"]
    y = ff + x
    y = (y - y.mean(-1, keepdims=True)) / jnp.sqrt(y.var(-1, keepdims=True) + LN_EPS)
    return y * p["g2"] + p["be2"]


if __name__ == "__main__":
    rng = jax.random.PRNGKey(0)
    kv, kk, kq, kp = jax.random.split(rng, 4)
    val = jax.random.normal(kv, (BATCH, SEQ, EMBED), jnp.float32)
    key = jax.random.normal(kk, (BATCH, SEQ, EMBED), jnp.float32)
    que = jax.random.normal(kq, (BATCH, SEQ, EMBED), jnp.float32)
    params = init_params(kp)

    # Parameter packing is hoisted out of the per-call path: done exactly ONCE here.
    packed = jax.block_until_ready(pack_params(params))

    out = transformer_block(val, key, que, *packed)
    jax.block_until_ready(out)

    ref = reference_block(val, key, que, params)
    assert out.shape == (BATCH, SEQ, EMBED)
    # Tolerance covers bf16 matmul operands (f32 accumulation) and the
    # approximate (EUP) reciprocal used in the softmax normalization.
    assert jnp.allclose(out, ref, rtol=2e-2, atol=2e-2), "mismatch vs pure-JAX reference"

    print("KERNEL_OK")
</pallas_src>

<mosaic_0001>
module attributes {stable_mosaic.version = 11 : i64} {
  func.func @transformer_block_kernel(%arg0: memref<16x32xf32, #tpu.memory_space<vmem>>, %arg1: memref<16x32xf32, #tpu.memory_space<vmem>>, %arg2: memref<8x24xbf16, #tpu.memory_space<vmem>>, %arg3: memref<32x160xbf16, #tpu.memory_space<vmem>>, %arg4: memref<128x32xbf16, #tpu.memory_space<vmem>>, %arg5: memref<8x128xf32, #tpu.memory_space<vmem>>, %arg6: memref<16x32xf32, #tpu.memory_space<vmem>>) attributes {dimension_semantics = [], scalar_prefetch = 0 : i64, scratch_operands = 0 : i64, tpu.core_type = #tpu.core_type<tc>} {
    %c0 = arith.constant 0 : index
    %c0_0 = arith.constant 0 : index
    %0 = vector.load %arg0[%c0, %c0_0] : memref<16x32xf32, #tpu.memory_space<vmem>>, vector<16x32xf32>
    %c0_1 = arith.constant 0 : index
    %c0_2 = arith.constant 0 : index
    %1 = vector.load %arg1[%c0_1, %c0_2] : memref<16x32xf32, #tpu.memory_space<vmem>>, vector<16x32xf32>
    %c0_3 = arith.constant 0 : index
    %c0_4 = arith.constant 0 : index
    %2 = vector.load %arg2[%c0_3, %c0_4] : memref<8x24xbf16, #tpu.memory_space<vmem>>, vector<8x24xbf16>
    %c0_5 = arith.constant 0 : index
    %c0_6 = arith.constant 0 : index
    %3 = vector.load %arg3[%c0_5, %c0_6] : memref<32x160xbf16, #tpu.memory_space<vmem>>, vector<32x32xbf16>
    %c0_7 = arith.constant 0 : index
    %c32 = arith.constant 32 : index
    %4 = vector.load %arg3[%c0_7, %c32] : memref<32x160xbf16, #tpu.memory_space<vmem>>, vector<32x128xbf16>
    %c0_8 = arith.constant 0 : index
    %c0_9 = arith.constant 0 : index
    %5 = vector.load %arg4[%c0_8, %c0_9] : memref<128x32xbf16, #tpu.memory_space<vmem>>, vector<128x32xbf16>
    %c0_10 = arith.constant 0 : index
    %c0_11 = arith.constant 0 : index
    %6 = vector.load %arg5[%c0_10, %c0_11] : memref<8x128xf32, #tpu.memory_space<vmem>>, vector<1x32xf32>
    %c1 = arith.constant 1 : index
    %c0_12 = arith.constant 0 : index
    %7 = vector.load %arg5[%c1, %c0_12] : memref<8x128xf32, #tpu.memory_space<vmem>>, vector<1x32xf32>
    %c2 = arith.constant 2 : index
    %c0_13 = arith.constant 0 : index
    %8 = vector.load %arg5[%c2, %c0_13] : memref<8x128xf32, #tpu.memory_space<vmem>>, vector<1x32xf32>
    %c3 = arith.constant 3 : index
    %c0_14 = arith.constant 0 : index
    %9 = vector.load %arg5[%c3, %c0_14] : memref<8x128xf32, #tpu.memory_space<vmem>>, vector<1x128xf32>
    %c4 = arith.constant 4 : index
    %c0_15 = arith.constant 0 : index
    %10 = vector.load %arg5[%c4, %c0_15] : memref<8x128xf32, #tpu.memory_space<vmem>>, vector<1x32xf32>
    %c5 = arith.constant 5 : index
    %c0_16 = arith.constant 0 : index
    %11 = vector.load %arg5[%c5, %c0_16] : memref<8x128xf32, #tpu.memory_space<vmem>>, vector<1x32xf32>
    %c6 = arith.constant 6 : index
    %c0_17 = arith.constant 0 : index
    %12 = vector.load %arg5[%c6, %c0_17] : memref<8x128xf32, #tpu.memory_space<vmem>>, vector<1x32xf32>
    %13 = vector.extract_strided_slice %0 {offsets = [0, 0], sizes = [16, 8], strides = [1, 1]} : vector<16x32xf32> to vector<16x8xf32>
    %14 = vector.extract_strided_slice %0 {offsets = [0, 8], sizes = [16, 8], strides = [1, 1]} : vector<16x32xf32> to vector<16x8xf32>
    %15 = vector.extract_strided_slice %0 {offsets = [0, 16], sizes = [16, 8], strides = [1, 1]} : vector<16x32xf32> to vector<16x8xf32>
    %16 = vector.extract_strided_slice %0 {offsets = [0, 24], sizes = [16, 8], strides = [1, 1]} : vector<16x32xf32> to vector<16x8xf32>
    %17 = tpu.concatenate %13, %14, %15, %16 in 0 : vector<16x8xf32>, vector<16x8xf32>, vector<16x8xf32>, vector<16x8xf32> -> vector<64x8xf32>
    %18 = arith.truncf %17 : vector<64x8xf32> to vector<64x8xbf16>
    %cst = arith.constant dense<0.000000e+00> : vector<64x24xf32>
    %19 = tpu.matmul %18, %2, %cst {dimension_numbers = #tpu.dot_dimension_numbers<[1], [0], [0], [1], [0, 0, 1, 1], [], []>} : vector<64x8xbf16>, vector<8x24xbf16>, vector<64x24xf32> -> vector<64x24xf32>
    %20 = vector.extract_strided_slice %19 {offsets = [0, 0], sizes = [64, 8], strides = [1, 1]} : vector<64x24xf32> to vector<64x8xf32>
    %21 = vector.shape_cast %20 : vector<64x8xf32> to vector<8x8x8xf32>
    %22 = vector.extract_strided_slice %19 {offsets = [0, 8], sizes = [64, 8], strides = [1, 1]} : vector<64x24xf32> to vector<64x8xf32>
    %23 = vector.shape_cast %22 : vector<64x8xf32> to vector<8x8x8xf32>
    %24 = vector.extract_strided_slice %19 {offsets = [0, 16], sizes = [64, 8], strides = [1, 1]} : vector<64x24xf32> to vector<64x8xf32>
    %25 = vector.shape_cast %24 : vector<64x8xf32> to vector<8x8x8xf32>
    %26 = arith.truncf %21 : vector<8x8x8xf32> to vector<8x8x8xbf16>
    %27 = arith.truncf %23 : vector<8x8x8xf32> to vector<8x8x8xbf16>
    "tpu.trace_start"() <{level = 10 : i32, message = "bqd,bkd->bqk"}> : () -> ()
    %cst_18 = arith.constant dense<0.000000e+00> : vector<8x8x8xf32>
    %28 = tpu.matmul %26, %27, %cst_18 {dimension_numbers = #tpu.dot_dimension_numbers<[2], [2], [1], [1], [0, 0, 0, 1, 1, 1], [0], [0]>} : vector<8x8x8xbf16>, vector<8x8x8xbf16>, vector<8x8x8xf32> -> vector<8x8x8xf32>
    "tpu.trace_stop"() : () -> ()
    %cst_19 = arith.constant dense<0xFF800000> : vector<8x8xf32>
    %29 = vector.multi_reduction <maximumf>, %28, %cst_19 [2] : vector<8x8x8xf32> to vector<8x8xf32>
    %30 = vector.shape_cast %29 : vector<8x8xf32> to vector<8x8x1xf32>
    %31 = vector.broadcast %30 : vector<8x8x1xf32> to vector<8x8x8xf32>
    %32 = arith.subf %28, %31 : vector<8x8x8xf32>
    %33 = math.exp %32 : vector<8x8x8xf32>
    %cst_20 = arith.constant dense<0.000000e+00> : vector<8x8xf32>
    %34 = vector.multi_reduction <add>, %33, %cst_20 [2] : vector<8x8x8xf32> to vector<8x8xf32>
    %35 = vector.shape_cast %34 : vector<8x8xf32> to vector<8x8x1xf32>
    %36 = tpu.reciprocal %35 {approx = true} : vector<8x8x1xf32> -> vector<8x8x1xf32>
    %37 = vector.broadcast %36 : vector<8x8x1xf32> to vector<8x8x8xf32>
    %38 = arith.mulf %33, %37 : vector<8x8x8xf32>
    %39 = arith.truncf %38 : vector<8x8x8xf32> to vector<8x8x8xbf16>
    %40 = arith.truncf %25 : vector<8x8x8xf32> to vector<8x8x8xbf16>
    "tpu.trace_start"() <{level = 10 : i32, message = "bqk,bkd->bqd"}> : () -> ()
    %cst_21 = arith.constant dense<0.000000e+00> : vector<8x8x8xf32>
    %41 = tpu.matmul %39, %40, %cst_21 {dimension_numbers = #tpu.dot_dimension_numbers<[2], [1], [1], [2], [0, 0, 0, 1, 1, 2], [0], [0]>} : vector<8x8x8xbf16>, vector<8x8x8xbf16>, vector<8x8x8xf32> -> vector<8x8x8xf32>
    "tpu.trace_stop"() : () -> ()
    %42 = vector.extract_strided_slice %41 {offsets = [0, 0, 0], sizes = [2, 8, 8], strides = [1, 1, 1]} : vector<8x8x8xf32> to vector<2x8x8xf32>
    %43 = vector.extract_strided_slice %41 {offsets = [2, 0, 0], sizes = [2, 8, 8], strides = [1, 1, 1]} : vector<8x8x8xf32> to vector<2x8x8xf32>
    %44 = vector.extract_strided_slice %41 {offsets = [4, 0, 0], sizes = [2, 8, 8], strides = [1, 1, 1]} : vector<8x8x8xf32> to vector<2x8x8xf32>
    %45 = vector.extract_strided_slice %41 {offsets = [6, 0, 0], sizes = [2, 8, 8], strides = [1, 1, 1]} : vector<8x8x8xf32> to vector<2x8x8xf32>
    %46 = tpu.concatenate %42, %43, %44, %45 in 2 : vector<2x8x8xf32>, vector<2x8x8xf32>, vector<2x8x8xf32>, vector<2x8x8xf32> -> vector<2x8x32xf32>
    %47 = vector.shape_cast %46 : vector<2x8x32xf32> to vector<16x32xf32>
    %48 = arith.truncf %47 : vector<16x32xf32> to vector<16x32xbf16>
    %cst_22 = arith.constant dense<0.000000e+00> : vector<16x32xf32>
    %49 = tpu.matmul %48, %3, %cst_22 {dimension_numbers = #tpu.dot_dimension_numbers<[1], [0], [0], [1], [0, 0, 1, 1], [], []>} : vector<16x32xbf16>, vector<32x32xbf16>, vector<16x32xf32> -> vector<16x32xf32>
    %50 = vector.broadcast %6 : vector<1x32xf32> to vector<16x32xf32>
    %51 = arith.addf %49, %50 : vector<16x32xf32>
    %52 = arith.addf %51, %1 : vector<16x32xf32>
    %cst_23 = arith.constant dense<0.000000e+00> : vector<16xf32>
    %53 = vector.multi_reduction <add>, %52, %cst_23 [1] : vector<16x32xf32> to vector<16xf32>
    %54 = vector.shape_cast %53 : vector<16xf32> to vector<16x1xf32>
    %cst_24 = arith.constant 3.200000e+01 : f32
    %55 = vector.broadcast %cst_24 : f32 to vector<16x1xf32>
    %56 = arith.divf %54, %55 : vector<16x1xf32>
    %57 = vector.broadcast %56 : vector<16x1xf32> to vector<16x32xf32>
    %58 = arith.subf %52, %57 : vector<16x32xf32>
    %59 = arith.mulf %58, %58 : vector<16x32xf32>
    %cst_25 = arith.constant dense<0.000000e+00> : vector<16xf32>
    %60 = vector.multi_reduction <add>, %59, %cst_25 [1] : vector<16x32xf32> to vector<16xf32>
    %61 = vector.shape_cast %60 : vector<16xf32> to vector<16x1xf32>
    %cst_26 = arith.constant 3.200000e+01 : f32
    %62 = vector.broadcast %cst_26 : f32 to vector<16x1xf32>
    %63 = arith.divf %61, %62 : vector<16x1xf32>
    %64 = vector.broadcast %56 : vector<16x1xf32> to vector<16x32xf32>
    %65 = arith.subf %52, %64 : vector<16x32xf32>
    %cst_27 = arith.constant 9.99999974E-6 : f32
    %66 = vector.broadcast %cst_27 : f32 to vector<16x1xf32>
    %67 = arith.addf %63, %66 : vector<16x1xf32>
    %68 = math.rsqrt %67 : vector<16x1xf32>
    %69 = vector.broadcast %68 : vector<16x1xf32> to vector<16x32xf32>
    %70 = arith.mulf %65, %69 : vector<16x32xf32>
    %71 = vector.broadcast %7 : vector<1x32xf32> to vector<16x32xf32>
    %72 = arith.mulf %70, %71 : vector<16x32xf32>
    %73 = vector.broadcast %8 : vector<1x32xf32> to vector<16x32xf32>
    %74 = arith.addf %72, %73 : vector<16x32xf32>
    %75 = arith.truncf %74 : vector<16x32xf32> to vector<16x32xbf16>
    %cst_28 = arith.constant dense<0.000000e+00> : vector<16x128xf32>
    %76 = tpu.matmul %75, %4, %cst_28 {dimension_numbers = #tpu.dot_dimension_numbers<[1], [0], [0], [1], [0, 0, 1, 1], [], []>} : vector<16x32xbf16>, vector<32x128xbf16>, vector<16x128xf32> -> vector<16x128xf32>
    %77 = vector.broadcast %9 : vector<1x128xf32> to vector<16x128xf32>
    %78 = arith.addf %76, %77 : vector<16x128xf32>
    %cst_29 = arith.constant 0.000000e+00 : f32
    %79 = vector.broadcast %cst_29 : f32 to vector<16x128xf32>
    %80 = arith.maximumf %78, %79 : vector<16x128xf32>
    %81 = arith.truncf %80 : vector<16x128xf32> to vector<16x128xbf16>
    %cst_30 = arith.constant dense<0.000000e+00> : vector<16x32xf32>
    %82 = tpu.matmul %81, %5, %cst_30 {dimension_numbers = #tpu.dot_dimension_numbers<[1], [0], [0], [1], [0, 0, 1, 1], [], []>} : vector<16x128xbf16>, vector<128x32xbf16>, vector<16x32xf32> -> vector<16x32xf32>
    %83 = vector.broadcast %10 : vector<1x32xf32> to vector<16x32xf32>
    %84 = arith.addf %82, %83 : vector<16x32xf32>
    %85 = arith.addf %84, %74 : vector<16x32xf32>
    %cst_31 = arith.constant dense<0.000000e+00> : vector<16xf32>
    %86 = vector.multi_reduction <add>, %85, %cst_31 [1] : vector<16x32xf32> to vector<16xf32>
    %87 = vector.shape_cast %86 : vector<16xf32> to vector<16x1xf32>
    %cst_32 = arith.constant 3.200000e+01 : f32
    %88 = vector.broadcast %cst_32 : f32 to vector<16x1xf32>
    %89 = arith.divf %87, %88 : vector<16x1xf32>
    %90 = vector.broadcast %89 : vector<16x1xf32> to vector<16x32xf32>
    %91 = arith.subf %85, %90 : vector<16x32xf32>
    %92 = arith.mulf %91, %91 : vector<16x32xf32>
    %cst_33 = arith.constant dense<0.000000e+00> : vector<16xf32>
    %93 = vector.multi_reduction <add>, %92, %cst_33 [1] : vector<16x32xf32> to vector<16xf32>
    %94 = vector.shape_cast %93 : vector<16xf32> to vector<16x1xf32>
    %cst_34 = arith.constant 3.200000e+01 : f32
    %95 = vector.broadcast %cst_34 : f32 to vector<16x1xf32>
    %96 = arith.divf %94, %95 : vector<16x1xf32>
    %97 = vector.broadcast %89 : vector<16x1xf32> to vector<16x32xf32>
    %98 = arith.subf %85, %97 : vector<16x32xf32>
    %cst_35 = arith.constant 9.99999974E-6 : f32
    %99 = vector.broadcast %cst_35 : f32 to vector<16x1xf32>
    %100 = arith.addf %96, %99 : vector<16x1xf32>
    %101 = math.rsqrt %100 : vector<16x1xf32>
    %102 = vector.broadcast %101 : vector<16x1xf32> to vector<16x32xf32>
    %103 = arith.mulf %98, %102 : vector<16x32xf32>
    %104 = vector.broadcast %11 : vector<1x32xf32> to vector<16x32xf32>
    %105 = arith.mulf %103, %104 : vector<16x32xf32>
    %106 = vector.broadcast %12 : vector<1x32xf32> to vector<16x32xf32>
    %107 = arith.addf %105, %106 : vector<16x32xf32>
    %c0_36 = arith.constant 0 : index
    %c0_37 = arith.constant 0 : index
    %108 = vector.load %arg6[%c0_36, %c0_37] : memref<16x32xf32, #tpu.memory_space<vmem>>, vector<16x32xf32>
    tpu.vector_store %arg6[%c0_36, %c0_37], %107 {strides = array<i32>} : memref<16x32xf32, #tpu.memory_space<vmem>>, vector<16x32xf32>,
    return
  }
}

</mosaic_0001>

<llo_original>
// kernel: transformer_block.1
$region0: #{transformer_block.1}
  #allocation0 [shape = 'u32[]', space=smem, size = 0x4, offset = 0x4, fixed_abs, tag = 'smem constant byte address 0x4 - core index']
  #allocation1 [shape = 'u32[144,128]{1,0:T(1,128)}', space=vmem, size = 0x12000, scoped, tag = 'internal scratch']
  %s0 = inlined_call_operand.vmem [shape: f32[16,32], index: 0, kind: input, shape index: {}]
  %s1 = inlined_call_operand.vmem [shape: f32[16,32], index: 1, kind: input, shape index: {}]
  %s2 = inlined_call_operand.vmem [shape: bf16[8,24], index: 2, kind: input, shape index: {}]
  %s3 = inlined_call_operand.vmem [shape: bf16[32,160], index: 3, kind: input, shape index: {}]
  %s4 = inlined_call_operand.vmem [shape: bf16[128,32], index: 4, kind: input, shape index: {}]
  %s5 = inlined_call_operand.vmem [shape: f32[8,128], index: 5, kind: input, shape index: {}]
  %s6 = inlined_call_operand.hbm [shape: f32[16,32], index: 6, kind: output, shape index: {}]
  %s7 = sld [smem:[#allocation0]]
  $region34: #{transformer_block.1} parent=0
    _
  %s9 = ssub.s32 1, %s7
  %s10 = scalar_select 0, %s9, %s7
  $region1: #{transformer_block.1} parent=0
    #allocation2 [shape = 'u8[8192]{0}', space=vmem, size = 0x2000, scoped, tag = 'output window, operand 0, single buffered']
    #allocation3 [shape = 's32[1]{0}', space=sflag, size = 0x4, scoped, tag = 'scoped memory for transformer_block.1']
    %11 = vsyncpa [#allocation3], 0
    // Predicated region
    $region2: #{transformer_block.1} parent=1 // pred_check
      _
    $region3: #{transformer_block.1} parent=1 // pred_check_branch
      %13 = sbr.rel (0) target = $region5
    $region4: #{transformer_block.1} parent=1 // pred_region
      _
    $region5: #{transformer_block.1} parent=1 // pred_fallthru
      _
    // Predicated region
    $region6: #{transformer_block.1} parent=1 // pred_check
      _
    $region7: #{transformer_block.1} parent=1 // pred_check_branch
      %15 = sbr.rel (0) target = $region9
    $region8: #{transformer_block.1} parent=1 // pred_region
      _
    $region9: #{transformer_block.1} parent=1 // pred_fallthru
      _
    // Predicated region
    $region10: #{transformer_block.1} parent=1 // pred_check
      _
    $region11: #{transformer_block.1} parent=1 // pred_check_branch
      %17 = sbr.rel (0) target = $region13
    $region12: #{transformer_block.1} parent=1 // pred_region
      _
    $region13: #{transformer_block.1} parent=1 // pred_fallthru
      _
    // Predicated region
    $region14: #{transformer_block.1} parent=1 // pred_check
      _
    $region15: #{transformer_block.1} parent=1 // pred_check_branch
      %19 = sbr.rel (0) target = $region17
    $region16: #{transformer_block.1} parent=1 // pred_region
      _
    $region17: #{transformer_block.1} parent=1 // pred_fallthru
      _
    // Predicated region
    $region18: #{transformer_block.1} parent=1 // pred_check
      _
    $region19: #{transformer_block.1} parent=1 // pred_check_branch
      %21 = sbr.rel (0) target = $region21
    $region20: #{transformer_block.1} parent=1 // pred_region
      _
    $region21: #{transformer_block.1} parent=1 // pred_fallthru
      _
    // Predicated region
    $region22: #{transformer_block.1} parent=1 // pred_check
      _
    $region23: #{transformer_block.1} parent=1 // pred_check_branch
      %23 = sbr.rel (0) target = $region25
    $region24: #{transformer_block.1} parent=1 // pred_region
      _
    $region25: #{transformer_block.1} parent=1 // pred_fallthru
      _
    %v25 = vld [vmem:[%s0] sm:$0xff]
    %v26 = vld [vmem:[%s0 + $0x8] sm:$0xff]
    %v27 = vld [vmem:[%s1] sm:$0xff]
    %v28 = vld [vmem:[%s1 + $0x8] sm:$0xff]
    %v29 = vld [vmem:[%s2] sm:$0xf]
    %v30 = vld [vmem:[%s3] sm:$0xf]
    %v31 = vld [vmem:[%s3 + $0x8] sm:$0xf]
    %v32 = vld [vmem:[%s3 + $0x10] sm:$0xf]
    %v33 = vld [vmem:[%s3 + $0x18] sm:$0xf]
    %v34 = vld [vmem:[%s3] sm:$0xff]
    %v35 = vld [vmem:[%s3 + $0x8] sm:$0xff]
    %v36 = vld [vmem:[%s3 + $0x10] sm:$0xff]
    %v37 = vld [vmem:[%s3 + $0x18] sm:$0xff]
    %v38 = vld [vmem:[%s4] sm:$0xf]
    %v39 = vld [vmem:[%s4 + $0x4] sm:$0xf]
    %v40 = vld [vmem:[%s4 + $0x8] sm:$0xf]
    %v41 = vld [vmem:[%s4 + $0xc] sm:$0xf]
    %v42 = vld [vmem:[%s4 + $0x10] sm:$0xf]
    %v43 = vld [vmem:[%s4 + $0x14] sm:$0xf]
    %v44 = vld [vmem:[%s4 + $0x18] sm:$0xf]
    %v45 = vld [vmem:[%s4 + $0x1c] sm:$0xf]
    %v46 = vld [vmem:[%s4 + $0x20] sm:$0xf]
    %v47 = vld [vmem:[%s4 + $0x24] sm:$0xf]
    %v48 = vld [vmem:[%s4 + $0x28] sm:$0xf]
    %v49 = vld [vmem:[%s4 + $0x2c] sm:$0xf]
    %v50 = vld [vmem:[%s4 + $0x30] sm:$0xf]
    %v51 = vld [vmem:[%s4 + $0x34] sm:$0xf]
    %v52 = vld [vmem:[%s4 + $0x38] sm:$0xf]
    %v53 = vld [vmem:[%s4 + $0x3c] sm:$0xf]
    %v54 = vld [vmem:[%s5] sm:$0x1]
    %v55 = vld [vmem:[%s5 + $0x1] sm:$0x1]
    %v56 = vld [vmem:[%s5 + $0x2] sm:$0x1]
    %v57 = vld [vmem:[%s5 + $0x3] sm:$0x1]
    %v58 = vld [vmem:[%s5 + $0x4] sm:$0x1]
    %v59 = vld [vmem:[%s5 + $0x5] sm:$0x1]
    %v60 = vld [vmem:[%s5 + $0x6] sm:$0x1]
    %63 = vrot.lane.b32.xlu0 %v25, 120
    %v64 = vpop.permute.xlu0 %63
    %65 = vrot.lane.b32.xlu0 %v26, 120
    %v66 = vpop.permute.xlu0 %65
    %69 = vrot.lane.b32.xlu0 %v25, 112
    %v70 = vpop.permute.xlu0 %69
    %71 = vrot.lane.b32.xlu0 %v26, 112
    %v72 = vpop.permute.xlu0 %71
    %75 = vrot.lane.b32.xlu0 %v25, 104
    %v76 = vpop.permute.xlu0 %75
    %77 = vrot.lane.b32.xlu0 %v26, 104
    %v78 = vpop.permute.xlu0 %77
    %v81 = vpack.c.bf16 %v26, %v25
    %v82 = vpack.c.bf16 %v66, %v64
    %v83 = vpack.c.bf16 %v72, %v70
    %v84 = vpack.c.bf16 %v78, %v76
    %vm85 = vcmask 64512
    %v87 = vsel %vm85, %v81, 0
    %v90 = vsel %vm85, %v82, 0
    %v93 = vsel %vm85, %v83, 0
    %v96 = vsel %vm85, %v84, 0
    %vm98 = vcmask 1043456
    %v100 = vsel %vm98, %v29, 0
    %102 = vmatprep.subr.bf16.mxu0 0
    %103 = vmatpush1.bf16.msra.mxu0 %v100
    %104 = vmatprep.subr.bf16.mxu0 0
    %105 = vmatpush1.bf16.msra.mxu0 0
    %106 = vmatprep.subr.bf16.mxu0 0
    %107 = vmatpush1.bf16.msra.mxu0 0
    %108 = vmatprep.subr.bf16.mxu0 0
    %109 = vmatpush1.bf16.msra.mxu0 0
    %110 = vmatprep.subr.bf16.mxu0 0
    %111 = vmatpush1.bf16.msra.mxu0 0
    %112 = vmatprep.subr.bf16.mxu0 0
    %113 = vmatpush1.bf16.msra.mxu0 0
    %114 = vmatprep.subr.bf16.mxu0 0
    %115 = vmatpush1.bf16.msra.mxu0 0
    %116 = vmatprep.subr.bf16.mxu0 0
    %117 = vmatpush1.bf16.msra.mxu0 0
    %118 = vmatprep.subr.bf16.mxu0 0
    %119 = vmatpush1.bf16.msra.mxu0 0
    %120 = vmatprep.subr.bf16.mxu0 0
    %121 = vmatpush1.bf16.msra.mxu0 0
    %122 = vmatprep.subr.bf16.mxu0 0
    %123 = vmatpush1.bf16.msra.mxu0 0
    %124 = vmatprep.subr.bf16.mxu0 0
    %125 = vmatpush1.bf16.msra.mxu0 0
    %126 = vmatprep.subr.bf16.mxu0 0
    %127 = vmatpush1.bf16.msra.mxu0 0
    %128 = vmatprep.subr.bf16.mxu0 0
    %129 = vmatpush1.bf16.msra.mxu0 0
    %130 = vmatprep.subr.bf16.mxu0 0
    %131 = vmatpush1.bf16.msra.mxu0 0
    %132 = vmatprep.subr.bf16.mxu0 0
    %133 = vmatpush1.bf16.msra.mxu0 0
    %134 = vmatprep.mubr.bf16.mxu0 0
    %135 = vmatmul.mubr.bf16.gmra.mrb[0].mxu0 %v87
    %v136 = vpop.f32.mrb[0].mxu0
    %v137 = vadd.f32 0.0, %v136
    %v138 = vpop.f32.mrb[0].mxu0
    %v139 = vpop.f32.mrb[0].mxu0
    %v140 = vadd.f32 0.0, %v139
    %v141 = vpop.f32.mrb[0].mxu0
    %142 = vmatprep.mubr.bf16.mxu0 0
    %143 = vmatmul.mubr.bf16.gmra.mrb[0].mxu0 %v90
    %v144 = vpop.f32.mrb[0].mxu0
    %v145 = vadd.f32 0.0, %v144
    %v146 = vpop.f32.mrb[0].mxu0
    %v147 = vpop.f32.mrb[0].mxu0
    %v148 = vadd.f32 0.0, %v147
    %v149 = vpop.f32.mrb[0].mxu0
    %150 = vmatprep.mubr.bf16.mxu0 0
    %151 = vmatmul.mubr.bf16.gmra.mrb[0].mxu0 %v93
    %v152 = vpop.f32.mrb[0].mxu0
    %v153 = vadd.f32 0.0, %v152
    %v154 = vpop.f32.mrb[0].mxu0
    %v155 = vpop.f32.mrb[0].mxu0
    %v156 = vadd.f32 0.0, %v155
    %v157 = vpop.f32.mrb[0].mxu0
    %158 = vmatprep.mubr.bf16.mxu0 0
    %159 = vmatmul.mubr.bf16.gmra.mrb[0].mxu0 %v96
    %v160 = vpop.f32.mrb[0].mxu0
    %v161 = vadd.f32 0.0, %v160
    %v162 = vpop.f32.mrb[0].mxu0
    %v163 = vpop.f32.mrb[0].mxu0
    %v164 = vadd.f32 0.0, %v163
    %v165 = vpop.f32.mrb[0].mxu0
    %166 = vdwg.mxu0
    %v167 = vpack.c.bf16 %v137, %v137
    %v168 = vpack.c.bf16 %v140, %v140
    %v169 = vpack.c.bf16 %v145, %v145
    %v170 = vpack.c.bf16 %v148, %v148
    %v171 = vpack.c.bf16 %v153, %v153
    %v172 = vpack.c.bf16 %v156, %v156
    %v173 = vpack.c.bf16 %v161, %v161
    %v174 = vpack.c.bf16 %v164, %v164
    %176 = vrot.lane.b32.xlu0 %v167, 120
    %v177 = vpop.permute.xlu0 %176
    %v179 = vsel %vm85, %v167, 0
    %v182 = vsel %vm85, %v177, 0
    %184 = vmatprep.subr.bf16.mxu0 0
    %185 = vmatpush1.bf16.xpose.msra.mxu0 %v182
    %186 = vmatprep.subr.bf16.mxu0 0
    %187 = vmatpush1.bf16.xpose.msra.mxu0 0
    %188 = vmatprep.subr.bf16.mxu0 0
    %189 = vmatpush1.bf16.xpose.msra.mxu0 0
    %190 = vmatprep.subr.bf16.mxu0 0
    %191 = vmatpush1.bf16.xpose.msra.mxu0 0
    %192 = vmatprep.subr.bf16.mxu0 0
    %193 = vmatpush1.bf16.xpose.msra.mxu0 0
    %194 = vmatprep.subr.bf16.mxu0 0
    %195 = vmatpush1.bf16.xpose.msra.mxu0 0
    %196 = vmatprep.subr.bf16.mxu0 0
    %197 = vmatpush1.bf16.xpose.msra.mxu0 0
    %198 = vmatprep.subr.bf16.mxu0 0
    %199 = vmatpush1.bf16.xpose.msra.mxu0 0
    %200 = vmatprep.subr.bf16.mxu0 0
    %201 = vmatpush1.bf16.xpose.msra.mxu0 0
    %202 = vmatprep.subr.bf16.mxu0 0
    %203 = vmatpush1.bf16.xpose.msra.mxu0 0
    %204 = vmatprep.subr.bf16.mxu0 0
    %205 = vmatpush1.bf16.xpose.msra.mxu0 0
    %206 = vmatprep.subr.bf16.mxu0 0
    %207 = vmatpush1.bf16.xpose.msra.mxu0 0
    %208 = vmatprep.subr.bf16.mxu0 0
    %209 = vmatpush1.bf16.xpose.msra.mxu0 0
    %210 = vmatprep.subr.bf16.mxu0 0
    %211 = vmatpush1.bf16.xpose.msra.mxu0 0
    %212 = vmatprep.subr.bf16.mxu0 0
    %213 = vmatpush1.bf16.xpose.msra.mxu0 0
    %214 = vmatprep.subr.bf16.mxu0 0
    %215 = vmatpush1.bf16.xpose.msra.mxu0 0
    %216 = vmatprep.mubr.bf16.mxu0 0
    %217 = vmatmul.mubr.bf16.gmra.mrb[0].mxu0 %v179
    %v218 = vpop.f32.mrb[0].mxu0
    %v219 = vadd.f32 0.0, %v218
    %v220 = vpop.f32.mrb[0].mxu0
    %v221 = vpop.f32.mrb[0].mxu0
    %v222 = vpop.f32.mrb[0].mxu0
    %223 = vdwg.mxu0
    %225 = vrot.lane.b32.xlu0 %v168, 120
    %v226 = vpop.permute.xlu0 %225
    %v228 = vsel %vm85, %v168, 0
    %v231 = vsel %vm85, %v226, 0
    %233 = vmatprep.subr.bf16.mxu0 0
    %234 = vmatpush1.bf16.xpose.msra.mxu0 %v231
    %235 = vmatprep.subr.bf16.mxu0 0
    %236 = vmatpush1.bf16.xpose.msra.mxu0 0
    %237 = vmatprep.subr.bf16.mxu0 0
    %238 = vmatpush1.bf16.xpose.msra.mxu0 0
    %239 = vmatprep.subr.bf16.mxu0 0
    %240 = vmatpush1.bf16.xpose.msra.mxu0 0
    %241 = vmatprep.subr.bf16.mxu0 0
    %242 = vmatpush1.bf16.xpose.msra.mxu0 0
    %243 = vmatprep.subr.bf16.mxu0 0
    %244 = vmatpush1.bf16.xpose.msra.mxu0 0
    %245 = vmatprep.subr.bf16.mxu0 0
    %246 = vmatpush1.bf16.xpose.msra.mxu0 0
    %247 = vmatprep.subr.bf16.mxu0 0
    %248 = vmatpush1.bf16.xpose.msra.mxu0 0
    %249 = vmatprep.subr.bf16.mxu0 0
    %250 = vmatpush1.bf16.xpose.msra.mxu0 0
    %251 = vmatprep.subr.bf16.mxu0 0
    %252 = vmatpush1.bf16.xpose.msra.mxu0 0
    %253 = vmatprep.subr.bf16.mxu0 0
    %254 = vmatpush1.bf16.xpose.msra.mxu0 0
    %255 = vmatprep.subr.bf16.mxu0 0
    %256 = vmatpush1.bf16.xpose.msra.mxu0 0
    %257 = vmatprep.subr.bf16.mxu0 0
    %258 = vmatpush1.bf16.xpose.msra.mxu0 0
    %259 = vmatprep.subr.bf16.mxu0 0
    %260 = vmatpush1.bf16.xpose.msra.mxu0 0
    %261 = vmatprep.subr.bf16.mxu0 0
    %262 = vmatpush1.bf16.xpose.msra.mxu0 0
    %263 = vmatprep.subr.bf16.mxu0 0
    %264 = vmatpush1.bf16.xpose.msra.mxu0 0
    %265 = vmatprep.mubr.bf16.mxu0 0
    %266 = vmatmul.mubr.bf16.gmra.mrb[0].mxu0 %v228
    %v267 = vpop.f32.mrb[0].mxu0
    %v268 = vadd.f32 0.0, %v267
    %v269 = vpop.f32.mrb[0].mxu0
    %v270 = vpop.f32.mrb[0].mxu0
    %v271 = vpop.f32.mrb[0].mxu0
    %272 = vdwg.mxu0
    %274 = vrot.lane.b32.xlu0 %v169, 120
    %v275 = vpop.permute.xlu0 %274
    %v277 = vsel %vm85, %v169, 0
    %v280 = vsel %vm85, %v275, 0
    %282 = vmatprep.subr.bf16.mxu0 0
    %283 = vmatpush1.bf16.xpose.msra.mxu0 %v280
    %284 = vmatprep.subr.bf16.mxu0 0
    %285 = vmatpush1.bf16.xpose.msra.mxu0 0
    %286 = vmatprep.subr.bf16.mxu0 0
    %287 = vmatpush1.bf16.xpose.msra.mxu0 0
    %288 = vmatprep.subr.bf16.mxu0 0
    %289 = vmatpush1.bf16.xpose.msra.mxu0 0
    %290 = vmatprep.subr.bf16.mxu0 0
    %291 = vmatpush1.bf16.xpose.msra.mxu0 0
    %292 = vmatprep.subr.bf16.mxu0 0
    %293 = vmatpush1.bf16.xpose.msra.mxu0 0
    %294 = vmatprep.subr.bf16.mxu0 0
    %295 = vmatpush1.bf16.xpose.msra.mxu0 0
    %296 = vmatprep.subr.bf16.mxu0 0
    %297 = vmatpush1.bf16.xpose.msra.mxu0 0
    %298 = vmatprep.subr.bf16.mxu0 0
    %299 = vmatpush1.bf16.xpose.msra.mxu0 0
    %300 = vmatprep.subr.bf16.mxu0 0
    %301 = vmatpush1.bf16.xpose.msra.mxu0 0
    %302 = vmatprep.subr.bf16.mxu0 0
    %303 = vmatpush1.bf16.xpose.msra.mxu0 0
    %304 = vmatprep.subr.bf16.mxu0 0
    %305 = vmatpush1.bf16.xpose.msra.mxu0 0
    %306 = vmatprep.subr.bf16.mxu0 0
    %307 = vmatpush1.bf16.xpose.msra.mxu0 0
    %308 = vmatprep.subr.bf16.mxu0 0
    %309 = vmatpush1.bf16.xpose.msra.mxu0 0
    %310 = vmatprep.subr.bf16.mxu0 0
    %311 = vmatpush1.bf16.xpose.msra.mxu0 0
    %312 = vmatprep.subr.bf16.mxu0 0
    %313 = vmatpush1.bf16.xpose.msra.mxu0 0
    %314 = vmatprep.mubr.bf16.mxu0 0
    %315 = vmatmul.mubr.bf16.gmra.mrb[0].mxu0 %v277
    %v316 = vpop.f32.mrb[0].mxu0
    %v317 = vadd.f32 0.0, %v316
    %v318 = vpop.f32.mrb[0].mxu0
    %v319 = vpop.f32.mrb[0].mxu0
    %v320 = vpop.f32.mrb[0].mxu0
    %321 = vdwg.mxu0
    %323 = vrot.lane.b32.xlu0 %v170, 120
    %v324 = vpop.permute.xlu0 %323
    %v326 = vsel %vm85, %v170, 0
    %v329 = vsel %vm85, %v324, 0
    %331 = vmatprep.subr.bf16.mxu0 0
    %332 = vmatpush1.bf16.xpose.msra.mxu0 %v329
    %333 = vmatprep.subr.bf16.mxu0 0
    %334 = vmatpush1.bf16.xpose.msra.mxu0 0
    %335 = vmatprep.subr.bf16.mxu0 0
    %336 = vmatpush1.bf16.xpose.msra.mxu0 0
    %337 = vmatprep.subr.bf16.mxu0 0
    %338 = vmatpush1.bf16.xpose.msra.mxu0 0
    %339 = vmatprep.subr.bf16.mxu0 0
    %340 = vmatpush1.bf16.xpose.msra.mxu0 0
    %341 = vmatprep.subr.bf16.mxu0 0
    %342 = vmatpush1.bf16.xpose.msra.mxu0 0
    %343 = vmatprep.subr.bf16.mxu0 0
    %344 = vmatpush1.bf16.xpose.msra.mxu0 0
    %345 = vmatprep.subr.bf16.mxu0 0
    %346 = vmatpush1.bf16.xpose.msra.mxu0 0
    %347 = vmatprep.subr.bf16.mxu0 0
    %348 = vmatpush1.bf16.xpose.msra.mxu0 0
    %349 = vmatprep.subr.bf16.mxu0 0
    %350 = vmatpush1.bf16.xpose.msra.mxu0 0
    %351 = vmatprep.subr.bf16.mxu0 0
    %352 = vmatpush1.bf16.xpose.msra.mxu0 0
    %353 = vmatprep.subr.bf16.mxu0 0
    %354 = vmatpush1.bf16.xpose.msra.mxu0 0
    %355 = vmatprep.subr.bf16.mxu0 0
    %356 = vmatpush1.bf16.xpose.msra.mxu0 0
    %357 = vmatprep.subr.bf16.mxu0 0
    %358 = vmatpush1.bf16.xpose.msra.mxu0 0
    %359 = vmatprep.subr.bf16.mxu0 0
    %360 = vmatpush1.bf16.xpose.msra.mxu0 0
    %361 = vmatprep.subr.bf16.mxu0 0
    %362 = vmatpush1.bf16.xpose.msra.mxu0 0
    %363 = vmatprep.mubr.bf16.mxu0 0
    %364 = vmatmul.mubr.bf16.gmra.mrb[0].mxu0 %v326
    %v365 = vpop.f32.mrb[0].mxu0
    %v366 = vadd.f32 0.0, %v365
    %v367 = vpop.f32.mrb[0].mxu0
    %v368 = vpop.f32.mrb[0].mxu0
    %v369 = vpop.f32.mrb[0].mxu0
    %370 = vdwg.mxu0
    %372 = vrot.lane.b32.xlu0 %v171, 120
    %v373 = vpop.permute.xlu0 %372
    %v375 = vsel %vm85, %v171, 0
    %v378 = vsel %vm85, %v373, 0
    %380 = vmatprep.subr.bf16.mxu0 0
    %381 = vmatpush1.bf16.xpose.msra.mxu0 %v378
    %382 = vmatprep.subr.bf16.mxu0 0
    %383 = vmatpush1.bf16.xpose.msra.mxu0 0
    %384 = vmatprep.subr.bf16.mxu0 0
    %385 = vmatpush1.bf16.xpose.msra.mxu0 0
    %386 = vmatprep.subr.bf16.mxu0 0
    %387 = vmatpush1.bf16.xpose.msra.mxu0 0
    %388 = vmatprep.subr.bf16.mxu0 0
    %389 = vmatpush1.bf16.xpose.msra.mxu0 0
    %390 = vmatprep.subr.bf16.mxu0 0
    %391 = vmatpush1.bf16.xpose.msra.mxu0 0
    %392 = vmatprep.subr.bf16.mxu0 0
    %393 = vmatpush1.bf16.xpose.msra.mxu0 0
    %394 = vmatprep.subr.bf16.mxu0 0
    %395 = vmatpush1.bf16.xpose.msra.mxu0 0
    %396 = vmatprep.subr.bf16.mxu0 0
    %397 = vmatpush1.bf16.xpose.msra.mxu0 0
    %398 = vmatprep.subr.bf16.mxu0 0
    %399 = vmatpush1.bf16.xpose.msra.mxu0 0
    %400 = vmatprep.subr.bf16.mxu0 0
    %401 = vmatpush1.bf16.xpose.msra.mxu0 0
    %402 = vmatprep.subr.bf16.mxu0 0
    %403 = vmatpush1.bf16.xpose.msra.mxu0 0
    %404 = vmatprep.subr.bf16.mxu0 0
    %405 = vmatpush1.bf16.xpose.msra.mxu0 0
    %406 = vmatprep.subr.bf16.mxu0 0
    %407 = vmatpush1.bf16.xpose.msra.mxu0 0
    %408 = vmatprep.subr.bf16.mxu0 0
    %409 = vmatpush1.bf16.xpose.msra.mxu0 0
    %410 = vmatprep.subr.bf16.mxu0 0
    %411 = vmatpush1.bf16.xpose.msra.mxu0 0
    %412 = vmatprep.mubr.bf16.mxu0 0
    %413 = vmatmul.mubr.bf16.gmra.mrb[0].mxu0 %v375
    %v414 = vpop.f32.mrb[0].mxu0
    %v415 = vadd.f32 0.0, %v414
    %v416 = vpop.f32.mrb[0].mxu0
    %v417 = vpop.f32.mrb[0].mxu0
    %v418 = vpop.f32.mrb[0].mxu0
    %419 = vdwg.mxu0
    %421 = vrot.lane.b32.xlu0 %v172, 120
    %v422 = vpop.permute.xlu0 %421
    %v424 = vsel %vm85, %v172, 0
    %v427 = vsel %vm85, %v422, 0
    %429 = vmatprep.subr.bf16.mxu0 0
    %430 = vmatpush1.bf16.xpose.msra.mxu0 %v427
    %431 = vmatprep.subr.bf16.mxu0 0
    %432 = vmatpush1.bf16.xpose.msra.mxu0 0
    %433 = vmatprep.subr.bf16.mxu0 0
    %434 = vmatpush1.bf16.xpose.msra.mxu0 0
    %435 = vmatprep.subr.bf16.mxu0 0
    %436 = vmatpush1.bf16.xpose.msra.mxu0 0
    %437 = vmatprep.subr.bf16.mxu0 0
    %438 = vmatpush1.bf16.xpose.msra.mxu0 0
    %439 = vmatprep.subr.bf16.mxu0 0
    %440 = vmatpush1.bf16.xpose.msra.mxu0 0
    %441 = vmatprep.subr.bf16.mxu0 0
    %442 = vmatpush1.bf16.xpose.msra.mxu0 0
    %443 = vmatprep.subr.bf16.mxu0 0
    %444 = vmatpush1.bf16.xpose.msra.mxu0 0
    %445 = vmatprep.subr.bf16.mxu0 0
    %446 = vmatpush1.bf16.xpose.msra.mxu0 0
    %447 = vmatprep.subr.bf16.mxu0 0
    %448 = vmatpush1.bf16.xpose.msra.mxu0 0
    %449 = vmatprep.subr.bf16.mxu0 0
    %450 = vmatpush1.bf16.xpose.msra.mxu0 0
    %451 = vmatprep.subr.bf16.mxu0 0
    %452 = vmatpush1.bf16.xpose.msra.mxu0 0
    %453 = vmatprep.subr.bf16.mxu0 0
    %454 = vmatpush1.bf16.xpose.msra.mxu0 0
    %455 = vmatprep.subr.bf16.mxu0 0
    %456 = vmatpush1.bf16.xpose.msra.mxu0 0
    %457 = vmatprep.subr.bf16.mxu0 0
    %458 = vmatpush1.bf16.xpose.msra.mxu0 0
    %459 = vmatprep.subr.bf16.mxu0 0
    %460 = vmatpush1.bf16.xpose.msra.mxu0 0
    %461 = vmatprep.mubr.bf16.mxu0 0
    %462 = vmatmul.mubr.bf16.gmra.mrb[0].mxu0 %v424
    %v463 = vpop.f32.mrb[0].mxu0
    %v464 = vadd.f32 0.0, %v463
    %v465 = vpop.f32.mrb[0].mxu0
    %v466 = vpop.f32.mrb[0].mxu0
    %v467 = vpop.f32.mrb[0].mxu0
    %468 = vdwg.mxu0
    %470 = vrot.lane.b32.xlu0 %v173, 120
    %v471 = vpop.permute.xlu0 %470
    %v473 = vsel %vm85, %v173, 0
    %v476 = vsel %vm85, %v471, 0
    %478 = vmatprep.subr.bf16.mxu0 0
    %479 = vmatpush1.bf16.xpose.msra.mxu0 %v476
    %480 = vmatprep.subr.bf16.mxu0 0
    %481 = vmatpush1.bf16.xpose.msra.mxu0 0
    %482 = vmatprep.subr.bf16.mxu0 0
    %483 = vmatpush1.bf16.xpose.msra.mxu0 0
    %484 = vmatprep.subr.bf16.mxu0 0
    %485 = vmatpush1.bf16.xpose.msra.mxu0 0
    %486 = vmatprep.subr.bf16.mxu0 0
    %487 = vmatpush1.bf16.xpose.msra.mxu0 0
    %488 = vmatprep.subr.bf16.mxu0 0
    %489 = vmatpush1.bf16.xpose.msra.mxu0 0
    %490 = vmatprep.subr.bf16.mxu0 0
    %491 = vmatpush1.bf16.xpose.msra.mxu0 0
    %492 = vmatprep.subr.bf16.mxu0 0
    %493 = vmatpush1.bf16.xpose.msra.mxu0 0
    %494 = vmatprep.subr.bf16.mxu0 0
    %495 = vmatpush1.bf16.xpose.msra.mxu0 0
    %496 = vmatprep.subr.bf16.mxu0 0
    %497 = vmatpush1.bf16.xpose.msra.mxu0 0
    %498 = vmatprep.subr.bf16.mxu0 0
    %499 = vmatpush1.bf16.xpose.msra.mxu0 0
    %500 = vmatprep.subr.bf16.mxu0 0
    %501 = vmatpush1.bf16.xpose.msra.mxu0 0
    %502 = vmatprep.subr.bf16.mxu0 0
    %503 = vmatpush1.bf16.xpose.msra.mxu0 0
    %504 = vmatprep.subr.bf16.mxu0 0
    %505 = vmatpush1.bf16.xpose.msra.mxu0 0
    %506 = vmatprep.subr.bf16.mxu0 0
    %507 = vmatpush1.bf16.xpose.msra.mxu0 0
    %508 = vmatprep.subr.bf16.mxu0 0
    %509 = vmatpush1.bf16.xpose.msra.mxu0 0
    %510 = vmatprep.mubr.bf16.mxu0 0
    %511 = vmatmul.mubr.bf16.gmra.mrb[0].mxu0 %v473
    %v512 = vpop.f32.mrb[0].mxu0
    %v513 = vadd.f32 0.0, %v512
    %v514 = vpop.f32.mrb[0].mxu0
    %v515 = vpop.f32.mrb[0].mxu0
    %v516 = vpop.f32.mrb[0].mxu0
    %517 = vdwg.mxu0
    %519 = vrot.lane.b32.xlu0 %v174, 120
    %v520 = vpop.permute.xlu0 %519
    %v522 = vsel %vm85, %v174, 0
    %v525 = vsel %vm85, %v520, 0
    %527 = vmatprep.subr.bf16.mxu0 0
    %528 = vmatpush1.bf16.xpose.msra.mxu0 %v525
    %529 = vmatprep.subr.bf16.mxu0 0
    %530 = vmatpush1.bf16.xpose.msra.mxu0 0
    %531 = vmatprep.subr.bf16.mxu0 0
    %532 = vmatpush1.bf16.xpose.msra.mxu0 0
    %533 = vmatprep.subr.bf16.mxu0 0
    %534 = vmatpush1.bf16.xpose.msra.mxu0 0
    %535 = vmatprep.subr.bf16.mxu0 0
    %536 = vmatpush1.bf16.xpose.msra.mxu0 0
    %537 = vmatprep.subr.bf16.mxu0 0
    %538 = vmatpush1.bf16.xpose.msra.mxu0 0
    %539 = vmatprep.subr.bf16.mxu0 0
    %540 = vmatpush1.bf16.xpose.msra.mxu0 0
    %541 = vmatprep.subr.bf16.mxu0 0
    %542 = vmatpush1.bf16.xpose.msra.mxu0 0
    %543 = vmatprep.subr.bf16.mxu0 0
    %544 = vmatpush1.bf16.xpose.msra.mxu0 0
    %545 = vmatprep.subr.bf16.mxu0 0
    %546 = vmatpush1.bf16.xpose.msra.mxu0 0
    %547 = vmatprep.subr.bf16.mxu0 0
    %548 = vmatpush1.bf16.xpose.msra.mxu0 0
    %549 = vmatprep.subr.bf16.mxu0 0
    %550 = vmatpush1.bf16.xpose.msra.mxu0 0
    %551 = vmatprep.subr.bf16.mxu0 0
    %552 = vmatpush1.bf16.xpose.msra.mxu0 0
    %553 = vmatprep.subr.bf16.mxu0 0
    %554 = vmatpush1.bf16.xpose.msra.mxu0 0
    %555 = vmatprep.subr.bf16.mxu0 0
    %556 = vmatpush1.bf16.xpose.msra.mxu0 0
    %557 = vmatprep.subr.bf16.mxu0 0
    %558 = vmatpush1.bf16.xpose.msra.mxu0 0
    %559 = vmatprep.mubr.bf16.mxu0 0
    %560 = vmatmul.mubr.bf16.gmra.mrb[0].mxu0 %v522
    %v561 = vpop.f32.mrb[0].mxu0
    %v562 = vadd.f32 0.0, %v561
    %v563 = vpop.f32.mrb[0].mxu0
    %v564 = vpop.f32.mrb[0].mxu0
    %v565 = vpop.f32.mrb[0].mxu0
    %566 = vdwg.mxu0
    %v567 = vsel %vm85, %v219, -inf
    %568 = vmax.xlane.f32.xlu0 %v567
    %v569 = vpop.xlane.xlu0 %568
    %v570 = vsel %vm85, %v268, -inf
    %571 = vmax.xlane.f32.xlu0 %v570
    %v572 = vpop.xlane.xlu0 %571
    %v573 = vsel %vm85, %v317, -inf
    %574 = vmax.xlane.f32.xlu0 %v573
    %v575 = vpop.xlane.xlu0 %574
    %v576 = vsel %vm85, %v366, -inf
    %577 = vmax.xlane.f32.xlu0 %v576
    %v578 = vpop.xlane.xlu0 %577
    %v579 = vsel %vm85, %v415, -inf
    %580 = vmax.xlane.f32.xlu0 %v579
    %v581 = vpop.xlane.xlu0 %580
    %v582 = vsel %vm85, %v464, -inf
    %583 = vmax.xlane.f32.xlu0 %v582
    %v584 = vpop.xlane.xlu0 %583
    %v585 = vsel %vm85, %v513, -inf
    %586 = vmax.xlane.f32.xlu0 %v585
    %v587 = vpop.xlane.xlu0 %586
    %v588 = vsel %vm85, %v562, -inf
    %589 = vmax.xlane.f32.xlu0 %v588
    %v590 = vpop.xlane.xlu0 %589
    %v591 = vsub.f32 %v219, %v569
    %v592 = vsub.f32 %v268, %v572
    %v593 = vsub.f32 %v317, %v575
    %v594 = vsub.f32 %v366, %v578
    %v595 = vsub.f32 %v415, %v581
    %v596 = vsub.f32 %v464, %v584
    %v597 = vsub.f32 %v513, %v587
    %v598 = vsub.f32 %v562, %v590
    %v599 = vmul.f32 %v591, 1.442695
    %v600 = vpow.pop %v599
    %v601 = vmul.f32 %v592, 1.442695
    %v602 = vpow.pop %v601
    %v603 = vmul.f32 %v593, 1.442695
    %v604 = vpow.pop %v603
    %v605 = vmul.f32 %v594, 1.442695
    %v606 = vpow.pop %v605
    %v607 = vmul.f32 %v595, 1.442695
    %v608 = vpow.pop %v607
    %v609 = vmul.f32 %v596, 1.442695
    %v610 = vpow.pop %v609
    %v611 = vmul.f32 %v597, 1.442695
    %v612 = vpow.pop %v611
    %v613 = vmul.f32 %v598, 1.442695
    %v614 = vpow.pop %v613
    %v615 = vsel %vm85, %v600, 0.0
    %616 = vadd.xlane.f32.xlu0 %v615
    %v617 = vpop.xlane.xlu0 %616
    %v618 = vsel %vm85, %v602, 0.0
    %619 = vadd.xlane.f32.xlu0 %v618
    %v620 = vpop.xlane.xlu0 %619
    %v621 = vsel %vm85, %v604, 0.0
    %622 = vadd.xlane.f32.xlu0 %v621
    %v623 = vpop.xlane.xlu0 %622
    %v624 = vsel %vm85, %v606, 0.0
    %625 = vadd.xlane.f32.xlu0 %v624
    %v626 = vpop.xlane.xlu0 %625
    %v627 = vsel %vm85, %v608, 0.0
    %628 = vadd.xlane.f32.xlu0 %v627
    %v629 = vpop.xlane.xlu0 %628
    %v630 = vsel %vm85, %v610, 0.0
    %631 = vadd.xlane.f32.xlu0 %v630
    %v632 = vpop.xlane.xlu0 %631
    %v633 = vsel %vm85, %v612, 0.0
    %634 = vadd.xlane.f32.xlu0 %v633
    %v635 = vpop.xlane.xlu0 %634
    %v636 = vsel %vm85, %v614, 0.0
    %637 = vadd.xlane.f32.xlu0 %v636
    %v638 = vpop.xlane.xlu0 %637
    %v639 = vrcp.pop %v617
    %v640 = vrcp.pop %v620
    %v641 = vrcp.pop %v623
    %v642 = vrcp.pop %v626
    %v643 = vrcp.pop %v629
    %v644 = vrcp.pop %v632
    %v645 = vrcp.pop %v635
    %v646 = vrcp.pop %v638
    %v647 = vmul.f32 %v600, %v639
    %v648 = vmul.f32 %v602, %v640
    %v649 = vmul.f32 %v604, %v641
    %v650 = vmul.f32 %v606, %v642
    %v651 = vmul.f32 %v608, %v643
    %v652 = vmul.f32 %v610, %v644
    %v653 = vmul.f32 %v612, %v645
    %v654 = vmul.f32 %v614, %v646
    %v655 = vpack.c.bf16 %v647, %v647
    %v656 = vpack.c.bf16 %v648, %v648
    %v657 = vpack.c.bf16 %v649, %v649
    %v658 = vpack.c.bf16 %v650, %v650
    %v659 = vpack.c.bf16 %v651, %v651
    %v660 = vpack.c.bf16 %v652, %v652
    %v661 = vpack.c.bf16 %v653, %v653
    %v662 = vpack.c.bf16 %v654, %v654
    %663 = vrot.lane.b32.xlu0 %v167, 112
    %v664 = vpop.permute.xlu0 %663
    %v666 = vsel %vm85, %v655, 0
    %v669 = vsel %vm98, %v664, 0
    %671 = vmatprep.subr.bf16.mxu0 0
    %672 = vmatpush1.bf16.msra.mxu0 %v669
    %673 = vmatprep.subr.bf16.mxu0 0
    %674 = vmatpush1.bf16.msra.mxu0 0
    %675 = vmatprep.subr.bf16.mxu0 0
    %676 = vmatpush1.bf16.msra.mxu0 0
    %677 = vmatprep.subr.bf16.mxu0 0
    %678 = vmatpush1.bf16.msra.mxu0 0
    %679 = vmatprep.subr.bf16.mxu0 0
    %680 = vmatpush1.bf16.msra.mxu0 0
    %681 = vmatprep.subr.bf16.mxu0 0
    %682 = vmatpush1.bf16.msra.mxu0 0
    %683 = vmatprep.subr.bf16.mxu0 0
    %684 = vmatpush1.bf16.msra.mxu0 0
    %685 = vmatprep.subr.bf16.mxu0 0
    %686 = vmatpush1.bf16.msra.mxu0 0
    %687 = vmatprep.subr.bf16.mxu0 0
    %688 = vmatpush1.bf16.msra.mxu0 0
    %689 = vmatprep.subr.bf16.mxu0 0
    %690 = vmatpush1.bf16.msra.mxu0 0
    %691 = vmatprep.subr.bf16.mxu0 0
    %692 = vmatpush1.bf16.msra.mxu0 0
    %693 = vmatprep.subr.bf16.mxu0 0
    %694 = vmatpush1.bf16.msra.mxu0 0
    %695 = vmatprep.subr.bf16.mxu0 0
    %696 = vmatpush1.bf16.msra.mxu0 0
    %697 = vmatprep.subr.bf16.mxu0 0
    %698 = vmatpush1.bf16.msra.mxu0 0
    %699 = vmatprep.subr.bf16.mxu0 0
    %700 = vmatpush1.bf16.msra.mxu0 0
    %701 = vmatprep.subr.bf16.mxu0 0
    %702 = vmatpush1.bf16.msra.mxu0 0
    %703 = vmatprep.mubr.bf16.mxu0 0
    %704 = vmatmul.mubr.bf16.gmra.mrb[0].mxu0 %v666
    %v705 = vpop.f32.mrb[0].mxu0
    %v706 = vadd.f32 0.0, %v705
    %v707 = vpop.f32.mrb[0].mxu0
    %v708 = vpop.f32.mrb[0].mxu0
    %v709 = vpop.f32.mrb[0].mxu0
    %710 = vdwg.mxu0
    %711 = vrot.lane.b32.xlu0 %v168, 112
    %v712 = vpop.permute.xlu0 %711
    %v714 = vsel %vm85, %v656, 0
    %v717 = vsel %vm98, %v712, 0
    %719 = vmatprep.subr.bf16.mxu0 0
    %720 = vmatpush1.bf16.msra.mxu0 %v717
    %721 = vmatprep.subr.bf16.mxu0 0
    %722 = vmatpush1.bf16.msra.mxu0 0
    %723 = vmatprep.subr.bf16.mxu0 0
    %724 = vmatpush1.bf16.msra.mxu0 0
    %725 = vmatprep.subr.bf16.mxu0 0
    %726 = vmatpush1.bf16.msra.mxu0 0
    %727 = vmatprep.subr.bf16.mxu0 0
    %728 = vmatpush1.bf16.msra.mxu0 0
    %729 = vmatprep.subr.bf16.mxu0 0
    %730 = vmatpush1.bf16.msra.mxu0 0
    %731 = vmatprep.subr.bf16.mxu0 0
    %732 = vmatpush1.bf16.msra.mxu0 0
    %733 = vmatprep.subr.bf16.mxu0 0
    %734 = vmatpush1.bf16.msra.mxu0 0
    %735 = vmatprep.subr.bf16.mxu0 0
    %736 = vmatpush1.bf16.msra.mxu0 0
    %737 = vmatprep.subr.bf16.mxu0 0
    %738 = vmatpush1.bf16.msra.mxu0 0
    %739 = vmatprep.subr.bf16.mxu0 0
    %740 = vmatpush1.bf16.msra.mxu0 0
    %741 = vmatprep.subr.bf16.mxu0 0
    %742 = vmatpush1.bf16.msra.mxu0 0
    %743 = vmatprep.subr.bf16.mxu0 0
    %744 = vmatpush1.bf16.msra.mxu0 0
    %745 = vmatprep.subr.bf16.mxu0 0
    %746 = vmatpush1.bf16.msra.mxu0 0
    %747 = vmatprep.subr.bf16.mxu0 0
    %748 = vmatpush1.bf16.msra.mxu0 0
    %749 = vmatprep.subr.bf16.mxu0 0
    %750 = vmatpush1.bf16.msra.mxu0 0
    %751 = vmatprep.mubr.bf16.mxu0 0
    %752 = vmatmul.mubr.bf16.gmra.mrb[0].mxu0 %v714
    %v753 = vpop.f32.mrb[0].mxu0
    %v754 = vadd.f32 0.0, %v753
    %v755 = vpop.f32.mrb[0].mxu0
    %v756 = vpop.f32.mrb[0].mxu0
    %v757 = vpop.f32.mrb[0].mxu0
    %758 = vdwg.mxu0
    %759 = vrot.lane.b32.xlu0 %v169, 112
    %v760 = vpop.permute.xlu0 %759
    %v762 = vsel %vm85, %v657, 0
    %v765 = vsel %vm98, %v760, 0
    %767 = vmatprep.subr.bf16.mxu0 0
    %768 = vmatpush1.bf16.msra.mxu0 %v765
    %769 = vmatprep.subr.bf16.mxu0 0
    %770 = vmatpush1.bf16.msra.mxu0 0
    %771 = vmatprep.subr.bf16.mxu0 0
    %772 = vmatpush1.bf16.msra.mxu0 0
    %773 = vmatprep.subr.bf16.mxu0 0
    %774 = vmatpush1.bf16.msra.mxu0 0
    %775 = vmatprep.subr.bf16.mxu0 0
    %776 = vmatpush1.bf16.msra.mxu0 0
    %777 = vmatprep.subr.bf16.mxu0 0
    %778 = vmatpush1.bf16.msra.mxu0 0
    %779 = vmatprep.subr.bf16.mxu0 0
    %780 = vmatpush1.bf16.msra.mxu0 0
    %781 = vmatprep.subr.bf16.mxu0 0
    %782 = vmatpush1.bf16.msra.mxu0 0
    %783 = vmatprep.subr.bf16.mxu0 0
    %784 = vmatpush1.bf16.msra.mxu0 0
    %785 = vmatprep.subr.bf16.mxu0 0
    %786 = vmatpush1.bf16.msra.mxu0 0
    %787 = vmatprep.subr.bf16.mxu0 0
    %788 = vmatpush1.bf16.msra.mxu0 0
    %789 = vmatprep.subr.bf16.mxu0 0
    %790 = vmatpush1.bf16.msra.mxu0 0
    %791 = vmatprep.subr.bf16.mxu0 0
    %792 = vmatpush1.bf16.msra.mxu0 0
    %793 = vmatprep.subr.bf16.mxu0 0
    %794 = vmatpush1.bf16.msra.mxu0 0
    %795 = vmatprep.subr.bf16.mxu0 0
    %796 = vmatpush1.bf16.msra.mxu0 0
    %797 = vmatprep.subr.bf16.mxu0 0
    %798 = vmatpush1.bf16.msra.mxu0 0
    %799 = vmatprep.mubr.bf16.mxu0 0
    %800 = vmatmul.mubr.bf16.gmra.mrb[0].mxu0 %v762
    %v801 = vpop.f32.mrb[0].mxu0
    %v802 = vadd.f32 0.0, %v801
    %v803 = vpop.f32.mrb[0].mxu0
    %v804 = vpop.f32.mrb[0].mxu0
    %v805 = vpop.f32.mrb[0].mxu0
    %806 = vdwg.mxu0
    %807 = vrot.lane.b32.xlu0 %v170, 112
    %v808 = vpop.permute.xlu0 %807
    %v810 = vsel %vm85, %v658, 0
    %v813 = vsel %vm98, %v808, 0
    %815 = vmatprep.subr.bf16.mxu0 0
    %816 = vmatpush1.bf16.msra.mxu0 %v813
    %817 = vmatprep.subr.bf16.mxu0 0
    %818 = vmatpush1.bf16.msra.mxu0 0
    %819 = vmatprep.subr.bf16.mxu0 0
    %820 = vmatpush1.bf16.msra.mxu0 0
    %821 = vmatprep.subr.bf16.mxu0 0
    %822 = vmatpush1.bf16.msra.mxu0 0
    %823 = vmatprep.subr.bf16.mxu0 0
    %824 = vmatpush1.bf16.msra.mxu0 0
    %825 = vmatprep.subr.bf16.mxu0 0
    %826 = vmatpush1.bf16.msra.mxu0 0
    %827 = vmatprep.subr.bf16.mxu0 0
    %828 = vmatpush1.bf16.msra.mxu0 0
    %829 = vmatprep.subr.bf16.mxu0 0
    %830 = vmatpush1.bf16.msra.mxu0 0
    %831 = vmatprep.subr.bf16.mxu0 0
    %832 = vmatpush1.bf16.msra.mxu0 0
    %833 = vmatprep.subr.bf16.mxu0 0
    %834 = vmatpush1.bf16.msra.mxu0 0
    %835 = vmatprep.subr.bf16.mxu0 0
    %836 = vmatpush1.bf16.msra.mxu0 0
    %837 = vmatprep.subr.bf16.mxu0 0
    %838 = vmatpush1.bf16.msra.mxu0 0
    %839 = vmatprep.subr.bf16.mxu0 0
    %840 = vmatpush1.bf16.msra.mxu0 0
    %841 = vmatprep.subr.bf16.mxu0 0
    %842 = vmatpush1.bf16.msra.mxu0 0
    %843 = vmatprep.subr.bf16.mxu0 0
    %844 = vmatpush1.bf16.msra.mxu0 0
    %845 = vmatprep.subr.bf16.mxu0 0
    %846 = vmatpush1.bf16.msra.mxu0 0
    %847 = vmatprep.mubr.bf16.mxu0 0
    %848 = vmatmul.mubr.bf16.gmra.mrb[0].mxu0 %v810
    %v849 = vpop.f32.mrb[0].mxu0
    %v850 = vadd.f32 0.0, %v849
    %v851 = vpop.f32.mrb[0].mxu0
    %v852 = vpop.f32.mrb[0].mxu0
    %v853 = vpop.f32.mrb[0].mxu0
    %854 = vdwg.mxu0
    %855 = vrot.lane.b32.xlu0 %v171, 112
    %v856 = vpop.permute.xlu0 %855
    %v858 = vsel %vm85, %v659, 0
    %v861 = vsel %vm98, %v856, 0
    %863 = vmatprep.subr.bf16.mxu0 0
    %864 = vmatpush1.bf16.msra.mxu0 %v861
    %865 = vmatprep.subr.bf16.mxu0 0
    %866 = vmatpush1.bf16.msra.mxu0 0
    %867 = vmatprep.subr.bf16.mxu0 0
    %868 = vmatpush1.bf16.msra.mxu0 0
    %869 = vmatprep.subr.bf16.mxu0 0
    %870 = vmatpush1.bf16.msra.mxu0 0
    %871 = vmatprep.subr.bf16.mxu0 0
    %872 = vmatpush1.bf16.msra.mxu0 0
    %873 = vmatprep.subr.bf16.mxu0 0
    %874 = vmatpush1.bf16.msra.mxu0 0
    %875 = vmatprep.subr.bf16.mxu0 0
    %876 = vmatpush1.bf16.msra.mxu0 0
    %877 = vmatprep.subr.bf16.mxu0 0
    %878 = vmatpush1.bf16.msra.mxu0 0
    %879 = vmatprep.subr.bf16.mxu0 0
    %880 = vmatpush1.bf16.msra.mxu0 0
    %881 = vmatprep.subr.bf16.mxu0 0
    %882 = vmatpush1.bf16.msra.mxu0 0
    %883 = vmatprep.subr.bf16.mxu0 0
    %884 = vmatpush1.bf16.msra.mxu0 0
    %885 = vmatprep.subr.bf16.mxu0 0
    %886 = vmatpush1.bf16.msra.mxu0 0
    %887 = vmatprep.subr.bf16.mxu0 0
    %888 = vmatpush1.bf16.msra.mxu0 0
    %889 = vmatprep.subr.bf16.mxu0 0
    %890 = vmatpush1.bf16.msra.mxu0 0
    %891 = vmatprep.subr.bf16.mxu0 0
    %892 = vmatpush1.bf16.msra.mxu0 0
    %893 = vmatprep.subr.bf16.mxu0 0
    %894 = vmatpush1.bf16.msra.mxu0 0
    %895 = vmatprep.mubr.bf16.mxu0 0
    %896 = vmatmul.mubr.bf16.gmra.mrb[0].mxu0 %v858
    %v897 = vpop.f32.mrb[0].mxu0
    %v898 = vadd.f32 0.0, %v897
    %v899 = vpop.f32.mrb[0].mxu0
    %v900 = vpop.f32.mrb[0].mxu0
    %v901 = vpop.f32.mrb[0].mxu0
    %902 = vdwg.mxu0
    %903 = vrot.lane.b32.xlu0 %v172, 112
    %v904 = vpop.permute.xlu0 %903
    %v906 = vsel %vm85, %v660, 0
    %v909 = vsel %vm98, %v904, 0
    %911 = vmatprep.subr.bf16.mxu0 0
    %912 = vmatpush1.bf16.msra.mxu0 %v909
    %913 = vmatprep.subr.bf16.mxu0 0
    %914 = vmatpush1.bf16.msra.mxu0 0
    %915 = vmatprep.subr.bf16.mxu0 0
    %916 = vmatpush1.bf16.msra.mxu0 0
    %917 = vmatprep.subr.bf16.mxu0 0
    %918 = vmatpush1.bf16.msra.mxu0 0
    %919 = vmatprep.subr.bf16.mxu0 0
    %920 = vmatpush1.bf16.msra.mxu0 0
    %921 = vmatprep.subr.bf16.mxu0 0
    %922 = vmatpush1.bf16.msra.mxu0 0
    %923 = vmatprep.subr.bf16.mxu0 0
    %924 = vmatpush1.bf16.msra.mxu0 0
    %925 = vmatprep.subr.bf16.mxu0 0
    %926 = vmatpush1.bf16.msra.mxu0 0
    %927 = vmatprep.subr.bf16.mxu0 0
    %928 = vmatpush1.bf16.msra.mxu0 0
    %929 = vmatprep.subr.bf16.mxu0 0
    %930 = vmatpush1.bf16.msra.mxu0 0
    %931 = vmatprep.subr.bf16.mxu0 0
    %932 = vmatpush1.bf16.msra.mxu0 0
    %933 = vmatprep.subr.bf16.mxu0 0
    %934 = vmatpush1.bf16.msra.mxu0 0
    %935 = vmatprep.subr.bf16.mxu0 0
    %936 = vmatpush1.bf16.msra.mxu0 0
    %937 = vmatprep.subr.bf16.mxu0 0
    %938 = vmatpush1.bf16.msra.mxu0 0
    %939 = vmatprep.subr.bf16.mxu0 0
    %940 = vmatpush1.bf16.msra.mxu0 0
    %941 = vmatprep.subr.bf16.mxu0 0
    %942 = vmatpush1.bf16.msra.mxu0 0
    %943 = vmatprep.mubr.bf16.mxu0 0
    %944 = vmatmul.mubr.bf16.gmra.mrb[0].mxu0 %v906
    %v945 = vpop.f32.mrb[0].mxu0
    %v946 = vadd.f32 0.0, %v945
    %v947 = vpop.f32.mrb[0].mxu0
    %v948 = vpop.f32.mrb[0].mxu0
    %v949 = vpop.f32.mrb[0].mxu0
    %950 = vdwg.mxu0
    %951 = vrot.lane.b32.xlu0 %v173, 112
    %v952 = vpop.permute.xlu0 %951
    %v954 = vsel %vm85, %v661, 0
    %v957 = vsel %vm98, %v952, 0
    %959 = vmatprep.subr.bf16.mxu0 0
    %960 = vmatpush1.bf16.msra.mxu0 %v957
    %961 = vmatprep.subr.bf16.mxu0 0
    %962 = vmatpush1.bf16.msra.mxu0 0
    %963 = vmatprep.subr.bf16.mxu0 0
    %964 = vmatpush1.bf16.msra.mxu0 0
    %965 = vmatprep.subr.bf16.mxu0 0
    %966 = vmatpush1.bf16.msra.mxu0 0
    %967 = vmatprep.subr.bf16.mxu0 0
    %968 = vmatpush1.bf16.msra.mxu0 0
    %969 = vmatprep.subr.bf16.mxu0 0
    %970 = vmatpush1.bf16.msra.mxu0 0
    %971 = vmatprep.subr.bf16.mxu0 0
    %972 = vmatpush1.bf16.msra.mxu0 0
    %973 = vmatprep.subr.bf16.mxu0 0
    %974 = vmatpush1.bf16.msra.mxu0 0
    %975 = vmatprep.subr.bf16.mxu0 0
    %976 = vmatpush1.bf16.msra.mxu0 0
    %977 = vmatprep.subr.bf16.mxu0 0
    %978 = vmatpush1.bf16.msra.mxu0 0
    %979 = vmatprep.subr.bf16.mxu0 0
    %980 = vmatpush1.bf16.msra.mxu0 0
    %981 = vmatprep.subr.bf16.mxu0 0
    %982 = vmatpush1.bf16.msra.mxu0 0
    %983 = vmatprep.subr.bf16.mxu0 0
    %984 = vmatpush1.bf16.msra.mxu0 0
    %985 = vmatprep.subr.bf16.mxu0 0
    %986 = vmatpush1.bf16.msra.mxu0 0
    %987 = vmatprep.subr.bf16.mxu0 0
    %988 = vmatpush1.bf16.msra.mxu0 0
    %989 = vmatprep.subr.bf16.mxu0 0
    %990 = vmatpush1.bf16.msra.mxu0 0
    %991 = vmatprep.mubr.bf16.mxu0 0
    %992 = vmatmul.mubr.bf16.gmra.mrb[0].mxu0 %v954
    %v993 = vpop.f32.mrb[0].mxu0
    %v994 = vadd.f32 0.0, %v993
    %v995 = vpop.f32.mrb[0].mxu0
    %v996 = vpop.f32.mrb[0].mxu0
    %v997 = vpop.f32.mrb[0].mxu0
    %998 = vdwg.mxu0
    %999 = vrot.lane.b32.xlu0 %v174, 112
    %v1000 = vpop.permute.xlu0 %999
    %v1002 = vsel %vm85, %v662, 0
    %v1005 = vsel %vm98, %v1000, 0
    %1007 = vmatprep.subr.bf16.mxu0 0
    %1008 = vmatpush1.bf16.msra.mxu0 %v1005
    %1009 = vmatprep.subr.bf16.mxu0 0
    %1010 = vmatpush1.bf16.msra.mxu0 0
    %1011 = vmatprep.subr.bf16.mxu0 0
    %1012 = vmatpush1.bf16.msra.mxu0 0
    %1013 = vmatprep.subr.bf16.mxu0 0
    %1014 = vmatpush1.bf16.msra.mxu0 0
    %1015 = vmatprep.subr.bf16.mxu0 0
    %1016 = vmatpush1.bf16.msra.mxu0 0
    %1017 = vmatprep.subr.bf16.mxu0 0
    %1018 = vmatpush1.bf16.msra.mxu0 0
    %1019 = vmatprep.subr.bf16.mxu0 0
    %1020 = vmatpush1.bf16.msra.mxu0 0
    %1021 = vmatprep.subr.bf16.mxu0 0
    %1022 = vmatpush1.bf16.msra.mxu0 0
    %1023 = vmatprep.subr.bf16.mxu0 0
    %1024 = vmatpush1.bf16.msra.mxu0 0
    %1025 = vmatprep.subr.bf16.mxu0 0
    %1026 = vmatpush1.bf16.msra.mxu0 0
    %1027 = vmatprep.subr.bf16.mxu0 0
    %1028 = vmatpush1.bf16.msra.mxu0 0
    %1029 = vmatprep.subr.bf16.mxu0 0
    %1030 = vmatpush1.bf16.msra.mxu0 0
    %1031 = vmatprep.subr.bf16.mxu0 0
    %1032 = vmatpush1.bf16.msra.mxu0 0
    %1033 = vmatprep.subr.bf16.mxu0 0
    %1034 = vmatpush1.bf16.msra.mxu0 0
    %1035 = vmatprep.subr.bf16.mxu0 0
    %1036 = vmatpush1.bf16.msra.mxu0 0
    %1037 = vmatprep.subr.bf16.mxu0 0
    %1038 = vmatpush1.bf16.msra.mxu0 0
    %1039 = vmatprep.mubr.bf16.mxu0 0
    %1040 = vmatmul.mubr.bf16.gmra.mrb[0].mxu0 %v1002
    %v1041 = vpop.f32.mrb[0].mxu0
    %v1042 = vadd.f32 0.0, %v1041
    %v1043 = vpop.f32.mrb[0].mxu0
    %v1044 = vpop.f32.mrb[0].mxu0
    %v1045 = vpop.f32.mrb[0].mxu0
    %1046 = vdwg.mxu0
    %1049 = vrot.lane.b32.xlu0 %v802, 8
    %v1050 = vpop.permute.xlu0 %1049
    %1051 = vrot.lane.b32.xlu0 %v850, 8
    %v1052 = vpop.permute.xlu0 %1051
    %1057 = vrot.lane.b32.xlu0 %v898, 16
    %v1058 = vpop.permute.xlu0 %1057
    %1059 = vrot.lane.b32.xlu0 %v946, 16
    %v1060 = vpop.permute.xlu0 %1059
    %1065 = vrot.lane.b32.xlu0 %v994, 24
    %v1066 = vpop.permute.xlu0 %1065
    %1067 = vrot.lane.b32.xlu0 %v1042, 24
    %v1068 = vpop.permute.xlu0 %1067
    %v1071 = vsel %vm85, %v706, %v1050
    %v1072 = vsel %vm85, %v754, %v1052
    %vm1073 = vcmask 130048
    %v1074 = vsel %vm1073, %v1071, %v1058
    %v1075 = vsel %vm1073, %v1072, %v1060
    %vm1076 = vcmask 195584
    %v1077 = vsel %vm1076, %v1074, %v1066
    %v1078 = vsel %vm1076, %v1075, %v1068
    %v1079 = vpack.c.bf16 %v1078, %v1077
    %v1080 = vlaneseq
    %v1081 = vshrl.u32 %v1080, 7
    %v1082 = vsub.s32 0, %v1081
    %v1083 = vrot.slane %v54, %v1082
    %v1088 = vunpack.c.l.b16 %v30
    %v1089 = vunpack.c.l.b16 %v31
    %v1090 = vunpack.c.l.b16 %v32
    %v1091 = vunpack.c.l.b16 %v33
    %v1092 = vpack.c.b16 %v1089, %v1088
    %v1093 = vpack.c.b16 %v1091, %v1090
    %vm1096 = vcmask 261120
    %v1098 = vsel %vm1096, %v1079, 0
    %1100 = vmatprep.subr.bf16.mxu0 0
    %1101 = vmatpush1.bf16.msra.mxu0 %v1092
    %1102 = vmatprep.subr.bf16.mxu0 0
    %1103 = vmatpush1.bf16.msra.mxu0 %v1093
    %1104 = vmatprep.subr.bf16.mxu0 0
    %1105 = vmatpush1.bf16.msra.mxu0 0
    %1106 = vmatprep.subr.bf16.mxu0 0
    %1107 = vmatpush1.bf16.msra.mxu0 0
    %1108 = vmatprep.subr.bf16.mxu0 0
    %1109 = vmatpush1.bf16.msra.mxu0 0
    %1110 = vmatprep.subr.bf16.mxu0 0
    %1111 = vmatpush1.bf16.msra.mxu0 0
    %1112 = vmatprep.subr.bf16.mxu0 0
    %1113 = vmatpush1.bf16.msra.mxu0 0
    %1114 = vmatprep.subr.bf16.mxu0 0
    %1115 = vmatpush1.bf16.msra.mxu0 0
    %1116 = vmatprep.subr.bf16.mxu0 0
    %1117 = vmatpush1.bf16.msra.mxu0 0
    %1118 = vmatprep.subr.bf16.mxu0 0
    %1119 = vmatpush1.bf16.msra.mxu0 0
    %1120 = vmatprep.subr.bf16.mxu0 0
    %1121 = vmatpush1.bf16.msra.mxu0 0
    %1122 = vmatprep.subr.bf16.mxu0 0
    %1123 = vmatpush1.bf16.msra.mxu0 0
    %1124 = vmatprep.subr.bf16.mxu0 0
    %1125 = vmatpush1.bf16.msra.mxu0 0
    %1126 = vmatprep.subr.bf16.mxu0 0
    %1127 = vmatpush1.bf16.msra.mxu0 0
    %1128 = vmatprep.subr.bf16.mxu0 0
    %1129 = vmatpush1.bf16.msra.mxu0 0
    %1130 = vmatprep.subr.bf16.mxu0 0
    %1131 = vmatpush1.bf16.msra.mxu0 0
    %1132 = vmatprep.mubr.bf16.mxu0 0
    %1133 = vmatmul.mubr.bf16.gmra.mrb[0].mxu0 %v1098
    %v1134 = vpop.f32.mrb[0].mxu0
    %v1135 = vadd.f32 %v1083, %v1134
    %v1136 = vpop.f32.mrb[0].mxu0
    %v1137 = vpop.f32.mrb[0].mxu0
    %v1138 = vadd.f32 %v1083, %v1137
    %v1139 = vpop.f32.mrb[0].mxu0
    %1140 = vdwg.mxu0
    %v1141 = vadd.f32 %v1135, %v27
    %v1142 = vadd.f32 %v1138, %v28
    %v1143 = vsel %vm1096, %v1141, 0.0
    %1144 = vadd.xlane.f32.xlu0 %v1143
    %v1145 = vpop.xlane.xlu0 %1144
    %v1146 = vsel %vm1096, %v1142, 0.0
    %1147 = vadd.xlane.f32.xlu0 %v1146
    %v1148 = vpop.xlane.xlu0 %1147
    %v1149 = vrcp.pop 32.0
    %v1150 = vmul.f32 %v1145, %v1149
    %v1151 = vmul.f32 %v1148, %v1149
    %v1152 = vsub.f32 %v1141, %v1150
    %v1153 = vsub.f32 %v1142, %v1151
    %v1154 = vmul.f32 %v1152, %v1152
    %v1155 = vmul.f32 %v1153, %v1153
    %v1156 = vsel %vm1096, %v1154, 0.0
    %1157 = vadd.xlane.f32.xlu0 %v1156
    %v1158 = vpop.xlane.xlu0 %1157
    %v1159 = vsel %vm1096, %v1155, 0.0
    %1160 = vadd.xlane.f32.xlu0 %v1159
    %v1161 = vpop.xlane.xlu0 %1160
    %v1162 = vmul.f32 %v1158, %v1149
    %v1163 = vmul.f32 %v1161, %v1149
    %v1164 = vadd.f32 %v1162, 1e-05
    %v1165 = vadd.f32 %v1163, 1e-05
    %v1166 = vrsqrt.pop %v1164
    %v1167 = vrsqrt.pop %v1165
    %v1168 = vmul.f32 %v1152, %v1166
    %v1169 = vmul.f32 %v1153, %v1167
    %v1170 = vlaneseq
    %v1171 = vshrl.u32 %v1170, 7
    %v1172 = vsub.s32 0, %v1171
    %v1173 = vrot.slane %v55, %v1172
    %v1174 = vmul.f32 %v1168, %v1173
    %v1175 = vmul.f32 %v1169, %v1173
    %v1176 = vlaneseq
    %v1177 = vshrl.u32 %v1176, 7
    %v1178 = vsub.s32 0, %v1177
    %v1179 = vrot.slane %v56, %v1178
    %v1180 = vadd.f32 %v1174, %v1179
    %v1181 = vadd.f32 %v1175, %v1179
    %v1182 = vpack.c.bf16 %v1181, %v1180
    %v1183 = vlaneseq
    %v1184 = vshrl.u32 %v1183, 7
    %v1185 = vsub.s32 0, %v1184
    %v1186 = vrot.slane %v57, %v1185
    %v1191 = vunpack.c.l.b16 %v34
    %v1192 = vunpack.c.h.b16 %v34
    %v1193 = vunpack.c.l.b16 %v35
    %v1194 = vunpack.c.h.b16 %v35
    %v1195 = vunpack.c.l.b16 %v36
    %v1196 = vunpack.c.h.b16 %v36
    %v1197 = vunpack.c.l.b16 %v37
    %v1198 = vunpack.c.h.b16 %v37
    %v1199 = vpack.c.b16 %v1193, %v1191
    %v1200 = vpack.c.b16 %v1194, %v1192
    %v1201 = vpack.c.b16 %v1197, %v1195
    %v1202 = vpack.c.b16 %v1198, %v1196
    %1203 = vrot.lane.b32.xlu0 %v1199, 96
    %v1204 = vpop.permute.xlu0 %1203
    %1205 = vrot.lane.b32.xlu0 %v1200, 96
    %v1206 = vpop.permute.xlu0 %1205
    %1207 = vrot.lane.b32.xlu0 %v1201, 96
    %v1208 = vpop.permute.xlu0 %1207
    %1209 = vrot.lane.b32.xlu0 %v1202, 96
    %v1210 = vpop.permute.xlu0 %1209
    %vm1211 = vcmask 785408
    %v1212 = vsel %vm1211, %v1204, %v1206
    %v1213 = vsel %vm1211, %v1208, %v1210
    %v1217 = vsel %vm1096, %v1182, 0
    %1219 = vmatprep.subr.bf16.mxu0 0
    %1220 = vmatpush1.bf16.msra.mxu0 %v1212
    %1221 = vmatprep.subr.bf16.mxu0 0
    %1222 = vmatpush1.bf16.msra.mxu0 %v1213
    %1223 = vmatprep.subr.bf16.mxu0 0
    %1224 = vmatpush1.bf16.msra.mxu0 0
    %1225 = vmatprep.subr.bf16.mxu0 0
    %1226 = vmatpush1.bf16.msra.mxu0 0
    %1227 = vmatprep.subr.bf16.mxu0 0
    %1228 = vmatpush1.bf16.msra.mxu0 0
    %1229 = vmatprep.subr.bf16.mxu0 0
    %1230 = vmatpush1.bf16.msra.mxu0 0
    %1231 = vmatprep.subr.bf16.mxu0 0
    %1232 = vmatpush1.bf16.msra.mxu0 0
    %1233 = vmatprep.subr.bf16.mxu0 0
    %1234 = vmatpush1.bf16.msra.mxu0 0
    %1235 = vmatprep.subr.bf16.mxu0 0
    %1236 = vmatpush1.bf16.msra.mxu0 0
    %1237 = vmatprep.subr.bf16.mxu0 0
    %1238 = vmatpush1.bf16.msra.mxu0 0
    %1239 = vmatprep.subr.bf16.mxu0 0
    %1240 = vmatpush1.bf16.msra.mxu0 0
    %1241 = vmatprep.subr.bf16.mxu0 0
    %1242 = vmatpush1.bf16.msra.mxu0 0
    %1243 = vmatprep.subr.bf16.mxu0 0
    %1244 = vmatpush1.bf16.msra.mxu0 0
    %1245 = vmatprep.subr.bf16.mxu0 0
    %1246 = vmatpush1.bf16.msra.mxu0 0
    %1247 = vmatprep.subr.bf16.mxu0 0
    %1248 = vmatpush1.bf16.msra.mxu0 0
    %1249 = vmatprep.subr.bf16.mxu0 0
    %1250 = vmatpush1.bf16.msra.mxu0 0
    %1251 = vmatprep.mubr.bf16.mxu0 0
    %1252 = vmatmul.mubr.bf16.gmra.mrb[0].mxu0 %v1217
    %v1253 = vpop.f32.mrb[0].mxu0
    %v1254 = vadd.f32 %v1186, %v1253
    %v1255 = vpop.f32.mrb[0].mxu0
    %v1256 = vpop.f32.mrb[0].mxu0
    %v1257 = vadd.f32 %v1186, %v1256
    %v1258 = vpop.f32.mrb[0].mxu0
    %1259 = vdwg.mxu0
    %v1260 = vmax.f32 %v1254, 0.0
    %v1261 = vmax.f32 %v1257, 0.0
    %v1262 = vpack.c.bf16 %v1261, %v1260
    %v1263 = vlaneseq
    %v1264 = vshrl.u32 %v1263, 7
    %v1265 = vsub.s32 0, %v1264
    %v1266 = vrot.slane %v58, %v1265
    %v1283 = vunpack.c.l.b16 %v38
    %v1284 = vunpack.c.l.b16 %v39
    %v1285 = vunpack.c.l.b16 %v40
    %v1286 = vunpack.c.l.b16 %v41
    %v1287 = vunpack.c.l.b16 %v42
    %v1288 = vunpack.c.l.b16 %v43
    %v1289 = vunpack.c.l.b16 %v44
    %v1290 = vunpack.c.l.b16 %v45
    %v1291 = vunpack.c.l.b16 %v46
    %v1292 = vunpack.c.l.b16 %v47
    %v1293 = vunpack.c.l.b16 %v48
    %v1294 = vunpack.c.l.b16 %v49
    %v1295 = vunpack.c.l.b16 %v50
    %v1296 = vunpack.c.l.b16 %v51
    %v1297 = vunpack.c.l.b16 %v52
    %v1298 = vunpack.c.l.b16 %v53
    %v1299 = vpack.c.b16 %v1284, %v1283
    %v1300 = vpack.c.b16 %v1286, %v1285
    %v1301 = vpack.c.b16 %v1288, %v1287
    %v1302 = vpack.c.b16 %v1290, %v1289
    %v1303 = vpack.c.b16 %v1292, %v1291
    %v1304 = vpack.c.b16 %v1294, %v1293
    %v1305 = vpack.c.b16 %v1296, %v1295
    %v1306 = vpack.c.b16 %v1298, %v1297
    %1315 = vmatprep.subr.bf16.mxu0 0
    %1316 = vmatpush1.bf16.msra.mxu0 %v1299
    %1317 = vmatprep.subr.bf16.mxu0 0
    %1318 = vmatpush1.bf16.msra.mxu0 %v1300
    %1319 = vmatprep.subr.bf16.mxu0 0
    %1320 = vmatpush1.bf16.msra.mxu0 %v1301
    %1321 = vmatprep.subr.bf16.mxu0 0
    %1322 = vmatpush1.bf16.msra.mxu0 %v1302
    %1323 = vmatprep.subr.bf16.mxu0 0
    %1324 = vmatpush1.bf16.msra.mxu0 %v1303
    %1325 = vmatprep.subr.bf16.mxu0 0
    %1326 = vmatpush1.bf16.msra.mxu0 %v1304
    %1327 = vmatprep.subr.bf16.mxu0 0
    %1328 = vmatpush1.bf16.msra.mxu0 %v1305
    %1329 = vmatprep.subr.bf16.mxu0 0
    %1330 = vmatpush1.bf16.msra.mxu0 %v1306
    %1331 = vmatprep.subr.bf16.mxu0 0
    %1332 = vmatpush1.bf16.msra.mxu0 0
    %1333 = vmatprep.subr.bf16.mxu0 0
    %1334 = vmatpush1.bf16.msra.mxu0 0
    %1335 = vmatprep.subr.bf16.mxu0 0
    %1336 = vmatpush1.bf16.msra.mxu0 0
    %1337 = vmatprep.subr.bf16.mxu0 0
    %1338 = vmatpush1.bf16.msra.mxu0 0
    %1339 = vmatprep.subr.bf16.mxu0 0
    %1340 = vmatpush1.bf16.msra.mxu0 0
    %1341 = vmatprep.subr.bf16.mxu0 0
    %1342 = vmatpush1.bf16.msra.mxu0 0
    %1343 = vmatprep.subr.bf16.mxu0 0
    %1344 = vmatpush1.bf16.msra.mxu0 0
    %1345 = vmatprep.subr.bf16.mxu0 0
    %1346 = vmatpush1.bf16.msra.mxu0 0
    %1347 = vmatprep.mubr.bf16.mxu0 0
    %1348 = vmatmul.mubr.bf16.gmra.mrb[0].mxu0 %v1262
    %v1349 = vpop.f32.mrb[0].mxu0
    %v1350 = vadd.f32 %v1266, %v1349
    %v1351 = vpop.f32.mrb[0].mxu0
    %v1352 = vpop.f32.mrb[0].mxu0
    %v1353 = vadd.f32 %v1266, %v1352
    %v1354 = vpop.f32.mrb[0].mxu0
    %1355 = vdwg.mxu0
    %v1356 = vadd.f32 %v1350, %v1180
    %v1357 = vadd.f32 %v1353, %v1181
    %v1358 = vsel %vm1096, %v1356, 0.0
    %1359 = vadd.xlane.f32.xlu0 %v1358
    %v1360 = vpop.xlane.xlu0 %1359
    %v1361 = vsel %vm1096, %v1357, 0.0
    %1362 = vadd.xlane.f32.xlu0 %v1361
    %v1363 = vpop.xlane.xlu0 %1362
    %v1364 = vmul.f32 %v1360, %v1149
    %v1365 = vmul.f32 %v1363, %v1149
    %v1366 = vsub.f32 %v1356, %v1364
    %v1367 = vsub.f32 %v1357, %v1365
    %v1368 = vmul.f32 %v1366, %v1366
    %v1369 = vmul.f32 %v1367, %v1367
    %v1370 = vsel %vm1096, %v1368, 0.0
    %1371 = vadd.xlane.f32.xlu0 %v1370
    %v1372 = vpop.xlane.xlu0 %1371
    %v1373 = vsel %vm1096, %v1369, 0.0
    %1374 = vadd.xlane.f32.xlu0 %v1373
    %v1375 = vpop.xlane.xlu0 %1374
    %v1376 = vmul.f32 %v1372, %v1149
    %v1377 = vmul.f32 %v1375, %v1149
    %v1378 = vadd.f32 %v1376, 1e-05
    %v1379 = vadd.f32 %v1377, 1e-05
    %v1380 = vrsqrt.pop %v1378
    %v1381 = vrsqrt.pop %v1379
    %v1382 = vmul.f32 %v1366, %v1380
    %v1383 = vmul.f32 %v1367, %v1381
    %v1384 = vlaneseq
    %v1385 = vshrl.u32 %v1384, 7
    %v1386 = vsub.s32 0, %v1385
    %v1387 = vrot.slane %v59, %v1386
    %v1388 = vmul.f32 %v1382, %v1387
    %v1389 = vmul.f32 %v1383, %v1387
    %v1390 = vlaneseq
    %v1391 = vshrl.u32 %v1390, 7
    %v1392 = vsub.s32 0, %v1391
    %v1393 = vrot.slane %v60, %v1392
    %v1394 = vadd.f32 %v1388, %v1393
    %v1395 = vadd.f32 %v1389, %v1393
    %1396 = vst.msk [vmem:[#allocation2] sm:$0xff] %vm1096, %v1394
    %1397 = vst.msk [vmem:[#allocation2 + $0x8] sm:$0xff] %vm1096, %v1395
    // Predicated region
    $region26: #{transformer_block.1} parent=1 // pred_check
      _
    $region27: #{transformer_block.1} parent=1 // pred_check_branch
      %1399 = sbr.rel (0) target = $region29
    $region28: #{transformer_block.1} parent=1 // pred_region
      %s1401 = ssub.s32 256, 256
      %1402 = vsyncadd [#allocation3], %s1401
      %s1403 = sshll.u32 [#allocation2], 4
      %s1404 = int_to_ptr.vmem [resolvable:$true] %s1403
      %1409 = dma.vmem_to_hbm [thread:$0]  %s1404, 256, %s6, [#allocation3], 128, 128, 8
    $region29: #{transformer_block.1} parent=1 // pred_fallthru
      _
    // Predicated region
    $region30: #{transformer_block.1} parent=1 // pred_check
      _
    $region31: #{transformer_block.1} parent=1 // pred_check_branch
      %1411 = sbr.rel (0) target = $region33
    $region32: #{transformer_block.1} parent=1 // pred_region
      %1412 = dma.done [#allocation3], 256
    $region33: #{transformer_block.1} parent=1 // pred_fallthru
      _
    %1413 = vsyncpa [#allocation3], 1

</llo_original>
